<compile_context>
chip_gen: v7x
topology: tpu7x:2x2x1
jax: 0.10.0
libtpu: 0.0.40
codegen_flags: <defaults>
</compile_context>

<pallas_src>
import functools

import jax
import jax.numpy as jnp
from jax import lax
from jax.experimental import pallas as pl
from jax.experimental.pallas import tpu as pltpu

K = 7
PAD = K // 2


def _round_up(x, m):
    return (x + m - 1) // m * m


def _block_bytes(nb, ct, hw_pad, itemsize, lp):
    """Approximate VMEM bytes for one grid step (2x-buffered in/out + scratch)."""
    in_blk = nb * _round_up(ct, 8) * hw_pad * itemsize
    out_blk = nb * hw_pad * 4
    scratch = _round_up(2 * nb, 8) * _round_up(lp, 128) * 4
    return 2 * in_blk + 2 * out_blk + scratch


def _pick_tiles(N, C, HW, itemsize, budget, lp):
    """Pick (batch block nb, channel tile ct) under a VMEM byte budget."""
    hw_pad = _round_up(HW, 128)
    nb = min(N, 8)
    if N >= 2:
        nb = min(nb, N // 2)          # keep >= 2 steps on the parallel axis (v7x 2 TCs)
    while N % nb:
        nb -= 1
    while nb > 1 and _block_bytes(nb, C, hw_pad, itemsize, lp) > budget:
        nb -= 1
        while N % nb:
            nb -= 1
    ct = C
    if _block_bytes(nb, C, hw_pad, itemsize, lp) > budget and C % 8 == 0:
        ct = 8
        for cand in range(8, C, 8):   # largest multiple-of-8 divisor that fits
            if C % cand == 0 and _block_bytes(nb, cand, hw_pad, itemsize, lp) <= budget:
                ct = cand
    # TODO(synk): pad/mask C when it exceeds the budget and C % 8 != 0.
    return nb, ct


def _spatial_attn_kernel(w_ref, b_ref, col_ref, x_ref, o_ref, pm_ref, *, W, L0):
    # w_ref : SMEM (2*K*K,)  flattened conv taps; "avg" taps pre-scaled by 1/C
    # b_ref : SMEM (1,)      conv bias
    # col_ref: VMEM (1, HW)  int32 column index (p mod W), host precomputed
    # x_ref : VMEM (nb, ct, HW)   lane-dense input block (this C tile)
    # o_ref : VMEM (nb, 1, HW)    lane-dense output block
    # pm_ref: VMEM (2*nb, Lp)     flat zero-margined running sum / max maps
    nb, ct, HW = x_ref.shape
    Lp = pm_ref.shape[1]
    c_idx = pl.program_id(1)
    n_c = pl.num_programs(1)

    # ---- zero only the flat margins the conv actually reads (once per n-block) ----
    @pl.when(c_idx == 0)
    def _zero_margins():
        pm_ref[:, 0:L0] = jnp.zeros((2 * nb, L0), jnp.float32)
        pm_ref[:, L0 + HW:Lp] = jnp.zeros((2 * nb, Lp - L0 - HW), jnp.float32)

    # ---- partial channel reduction, 8 channels per VALU op ----
    for n in range(nb):
        if ct >= 8:
            G = ct // 8
            s8 = x_ref[n, pl.ds(0, 8), :].astype(jnp.float32)
            m8 = s8
            if G > 1:
                if G <= 8:                       # short: fully unrolled statically
                    for g in range(1, G):
                        xg = x_ref[n, pl.ds(g * 8, 8), :].astype(jnp.float32)
                        s8 = s8 + xg
                        m8 = jnp.maximum(m8, xg)
                else:
                    def body(g, carry):
                        s_a, m_a = carry
                        c0 = pl.multiple_of(g * 8, 8)
                        xg = x_ref[n, pl.ds(c0, 8), :].astype(jnp.float32)
                        return s_a + xg, jnp.maximum(m_a, xg)
                    s8, m8 = lax.fori_loop(1, G, body, (s8, m8), unroll=8)
            s = jnp.sum(s8, axis=0, keepdims=True)         # (1, HW) sublane reduce
            m = jnp.max(m8, axis=0, keepdims=True)
            rem = ct - 8 * G
            if rem:
                xt = x_ref[n, pl.ds(8 * G, rem), :].astype(jnp.float32)
                s = s + jnp.sum(xt, axis=0, keepdims=True)
                m = jnp.maximum(m, jnp.max(xt, axis=0, keepdims=True))
        else:
            xs = x_ref[n].astype(jnp.float32)              # (ct, HW), tiny C
            s = jnp.sum(xs, axis=0, keepdims=True)
            m = jnp.max(xs, axis=0, keepdims=True)

        # carry running sum / max across C-grid steps in the scratch interior
        @pl.when(c_idx == 0)
        def _init(n=n, s=s, m=m):
            pm_ref[2 * n:2 * n + 1, L0:L0 + HW] = s
            pm_ref[2 * n + 1:2 * n + 2, L0:L0 + HW] = m

        @pl.when(c_idx > 0)
        def _accum(n=n, s=s, m=m):
            ps = pm_ref[2 * n:2 * n + 1, L0:L0 + HW]
            pmx = pm_ref[2 * n + 1:2 * n + 2, L0:L0 + HW]
            pm_ref[2 * n:2 * n + 1, L0:L0 + HW] = ps + s
            pm_ref[2 * n + 1:2 * n + 2, L0:L0 + HW] = jnp.maximum(pmx, m)

    # ---- 7x7 conv over the two derived maps + sigmoid, on the last C step ----
    @pl.when(c_idx == n_c - 1)
    def _finalize():
        # hoist the 98 SMEM tap reads (and bias splat) out of the batch loop
        wa = [w_ref[t] for t in range(K * K)]              # "avg" taps (1/C folded)
        wm = [w_ref[K * K + t] for t in range(K * K)]
        bias_map = jnp.full((1, HW), b_ref[0], dtype=jnp.float32)

        # column-validity masks for horizontal taps in the flat lane layout
        col = col_ref[...]                                 # (1, HW) int32: p mod W
        masks = {dj: jnp.logical_and(col + dj >= 0, col + dj < W)
                 for dj in range(-PAD, PAD + 1) if dj != 0}

        for n in range(nb):
            acc0 = bias_map
            acc1 = jnp.zeros((1, HW), jnp.float32)
            for dj in range(-PAD, PAD + 1):
                kw = dj + PAD
                part = None
                for kh in range(K):
                    off = L0 + (kh - PAD) * W + dj         # >= 0 by construction
                    s_sh = pm_ref[2 * n:2 * n + 1, off:off + HW]
                    m_sh = pm_ref[2 * n + 1:2 * n + 2, off:off + HW]
                    tap = wa[kh * K + kw] * s_sh + wm[kh * K + kw] * m_sh
                    part = tap if part is None else part + tap
                if dj != 0:
                    part = jnp.where(masks[dj], part, 0.0)
                if kw & 1:
                    acc1 = acc1 + part
                else:
                    acc0 = acc0 + part
            o_ref[n] = jax.nn.sigmoid(acc0 + acc1).astype(o_ref.dtype)


def spatial_attention(x, weight, bias, *, c_tile=None):
    """x: (N, C, H, W); weight: (1, 2, 7, 7) OIHW; bias: (1,).  Returns (N, 1, H, W)."""
    N, C, H, W = x.shape
    HW = H * W
    L0 = PAD * (W + 1)                         # left margin of the flat padded maps
    Lp = _round_up(HW + 2 * L0, 128)           # lane-aligned flat padded length

    # Fold 1/C into the "avg" taps so the kernel only needs a channel SUM.
    w = weight.astype(jnp.float32)
    w = w.at[:, 0].multiply(1.0 / C)
    w_flat = w.reshape(-1)                     # (2*K*K,) = [avg taps | max taps]
    b = bias.astype(jnp.float32).reshape(-1)
    col_idx = (jnp.arange(HW, dtype=jnp.int32) % W).reshape(1, HW)
    x_flat = x.reshape(N, C, HW)               # lane-dense input layout

    # Generation-aware VMEM budget (v7x: 64 MiB physical, v5e/v6e: 128 MiB).
    try:
        vmem_cap = int(pltpu.get_tpu_info().vmem_capacity_bytes)
    except Exception:
        vmem_cap = 64 << 20
    usable = (vmem_cap * 7) // 8
    itemsize = x.dtype.itemsize

    nb, ct = _pick_tiles(N, C, HW, itemsize, usable // 2, Lp)
    if c_tile is not None and C % c_tile == 0 and (c_tile % 8 == 0 or c_tile == C):
        ct = c_tile
    n_ct = C // ct

    vmem_limit = int(min(usable,
                         max(16 << 20,
                             _block_bytes(nb, ct, _round_up(HW, 128), itemsize, Lp)
                             + (4 << 20))))

    kernel = functools.partial(_spatial_attn_kernel, W=W, L0=L0)

    out = pl.pallas_call(
        kernel,
        out_shape=jax.ShapeDtypeStruct((N, 1, HW), jnp.float32),
        grid_spec=pltpu.PrefetchScalarGridSpec(
            num_scalar_prefetch=0,
            grid=(N // nb, n_ct),
            in_specs=[
                pl.BlockSpec(memory_space=pltpu.MemorySpace.SMEM),    # conv taps
                pl.BlockSpec(memory_space=pltpu.MemorySpace.SMEM),    # conv bias
                pl.BlockSpec((1, HW), lambda n, c: (0, 0)),           # column index
                pl.BlockSpec((nb, ct, HW), lambda n, c: (n, c, 0)),   # lane-dense x
            ],
            out_specs=pl.BlockSpec((nb, 1, HW), lambda n, c: (n, 0, 0)),
            scratch_shapes=[pltpu.VMEM((2 * nb, Lp), jnp.float32)],
        ),
        compiler_params=pltpu.CompilerParams(
            dimension_semantics=("parallel", "arbitrary"),
            vmem_limit_bytes=vmem_limit),
    )(w_flat, b, col_idx, x_flat)

    return out.reshape(N, 1, H, W)


def spatial_attention_reference(x, weight, bias):
    """Pure-JAX reference: mean/max over channels -> 7x7 conv (pad=3) -> sigmoid."""
    xf = x.astype(jnp.float32)
    avg = jnp.mean(xf, axis=1, keepdims=True)
    mx = jnp.max(xf, axis=1, keepdims=True)
    feat = jnp.concatenate([avg, mx], axis=1)                 # (N, 2, H, W)
    out = lax.conv_general_dilated(
        feat, weight.astype(jnp.float32), window_strides=(1, 1),
        padding=((PAD, PAD), (PAD, PAD)),
        dimension_numbers=("NCHW", "OIHW", "NCHW"))
    return jax.nn.sigmoid(out + bias.reshape(1, -1, 1, 1))


if __name__ == "__main__":
    key = jax.random.PRNGKey(0)

    def run_case(N, C, H, W, c_tile=None):
        kx, kw, kb = jax.random.split(jax.random.fold_in(key, N * 1000 + C), 3)
        x = jax.random.normal(kx, (N, C, H, W), dtype=jnp.float32)
        weight = 0.1 * jax.random.normal(kw, (1, 2, K, K), dtype=jnp.float32)
        bias = 0.1 * jax.random.normal(kb, (1,), dtype=jnp.float32)
        out = jax.block_until_ready(spatial_attention(x, weight, bias, c_tile=c_tile))
        ref = jax.block_until_ready(spatial_attention_reference(x, weight, bias))
        assert out.shape == (N, 1, H, W), out.shape
        err = jnp.max(jnp.abs(out - ref))
        assert jnp.allclose(out, ref, atol=1e-5, rtol=1e-5), \
            f"({N},{C},{H},{W}) max abs err = {err}"

    run_case(2, 4, 16, 16)               # primary small config
    run_case(2, 20, 16, 16)              # exercises the 8-wide + remainder reduce
    run_case(2, 16, 16, 16, c_tile=8)    # exercises the C-tiled accumulate path
    print("KERNEL_OK")
</pallas_src>

<mosaic_0001>
module attributes {stable_mosaic.version = 11 : i64} {
  func.func @_spatial_attn_kernel(%arg0: i32, %arg1: i32, %arg2: memref<98xf32, #tpu.memory_space<smem>>, %arg3: memref<1xf32, #tpu.memory_space<smem>>, %arg4: memref<1x256xi32, #tpu.memory_space<vmem>>, %arg5: memref<1x4x256xf32, #tpu.memory_space<vmem>>, %arg6: memref<1x1x256xf32, #tpu.memory_space<vmem>>, %arg7: memref<2x384xf32, #tpu.memory_space<vmem>>) attributes {dimension_semantics = [#tpu.dimension_semantics<parallel>, #tpu.dimension_semantics<arbitrary>], iteration_bounds = array<i64: 2, 1>, scalar_prefetch = 0 : i64, scratch_operands = 1 : i64, tpu.core_type = #tpu.core_type<tc>, window_params = [{transform_indices = @transform_0, window_bounds = array<i64: 98>}, {transform_indices = @transform_1, window_bounds = array<i64: 1>}, {pipeline_mode = #tpu.pipeline_mode<synchronous>, transform_indices = @transform_2, window_bounds = array<i64: 1, 256>}, {transform_indices = @transform_3, window_bounds = array<i64: 1, 4, 256>}, {transform_indices = @transform_4, window_bounds = array<i64: 1, 1, 256>}]} {
    %c0_i32 = arith.constant 0 : i32
    %0 = arith.cmpi eq, %arg1, %c0_i32 : i32
    %1 = arith.extui %0 : i1 to i32
    %c0_i32_0 = arith.constant 0 : i32
    %2 = arith.cmpi ne, %1, %c0_i32_0 : i32
    scf.if %2 {
      %cst_10 = arith.constant 0.000000e+00 : f32
      %18 = vector.broadcast %cst_10 : f32 to vector<2x51xf32>
      %c0_11 = arith.constant 0 : index
      %c0_12 = arith.constant 0 : index
      %19 = vector.load %arg7[%c0_11, %c0_12] : memref<2x384xf32, #tpu.memory_space<vmem>>, vector<2x51xf32>
      tpu.vector_store %arg7[%c0_11, %c0_12], %18 {strides = array<i32>} : memref<2x384xf32, #tpu.memory_space<vmem>>, vector<2x51xf32>,
      %cst_13 = arith.constant 0.000000e+00 : f32
      %20 = vector.broadcast %cst_13 : f32 to vector<2x77xf32>
      %c0_14 = arith.constant 0 : index
      %c307 = arith.constant 307 : index
      %21 = vector.load %arg7[%c0_14, %c307] : memref<2x384xf32, #tpu.memory_space<vmem>>, vector<2x77xf32>
      tpu.vector_store %arg7[%c0_14, %c307], %20 {strides = array<i32>} : memref<2x384xf32, #tpu.memory_space<vmem>>, vector<2x77xf32>,
    } else {
    }
    %c0 = arith.constant 0 : index
    %c0_1 = arith.constant 0 : index
    %c0_2 = arith.constant 0 : index
    %3 = vector.load %arg5[%c0, %c0_1, %c0_2] : memref<1x4x256xf32, #tpu.memory_space<vmem>>, vector<1x4x256xf32>
    %4 = vector.shape_cast %3 : vector<1x4x256xf32> to vector<4x256xf32>
    %cst = arith.constant dense<0.000000e+00> : vector<256xf32>
    %5 = vector.multi_reduction <add>, %4, %cst [0] : vector<4x256xf32> to vector<256xf32>
    %6 = vector.shape_cast %5 : vector<256xf32> to vector<1x256xf32>
    %cst_3 = arith.constant dense<0xFF800000> : vector<256xf32>
    %7 = vector.multi_reduction <maximumf>, %4, %cst_3 [0] : vector<4x256xf32> to vector<256xf32>
    %8 = vector.shape_cast %7 : vector<256xf32> to vector<1x256xf32>
    %c0_i32_4 = arith.constant 0 : i32
    %9 = arith.cmpi eq, %arg1, %c0_i32_4 : i32
    %10 = arith.extui %9 : i1 to i32
    %c0_i32_5 = arith.constant 0 : i32
    %11 = arith.cmpi ne, %10, %c0_i32_5 : i32
    scf.if %11 {
      %c0_10 = arith.constant 0 : index
      %c51 = arith.constant 51 : index
      %18 = vector.load %arg7[%c0_10, %c51] : memref<2x384xf32, #tpu.memory_space<vmem>>, vector<1x256xf32>
      tpu.vector_store %arg7[%c0_10, %c51], %6 {strides = array<i32>} : memref<2x384xf32, #tpu.memory_space<vmem>>, vector<1x256xf32>,
      %c1 = arith.constant 1 : index
      %c51_11 = arith.constant 51 : index
      %19 = vector.load %arg7[%c1, %c51_11] : memref<2x384xf32, #tpu.memory_space<vmem>>, vector<1x256xf32>
      tpu.vector_store %arg7[%c1, %c51_11], %8 {strides = array<i32>} : memref<2x384xf32, #tpu.memory_space<vmem>>, vector<1x256xf32>,
    } else {
    }
    %c0_i32_6 = arith.constant 0 : i32
    %12 = arith.cmpi sgt, %arg1, %c0_i32_6 : i32
    %13 = arith.extui %12 : i1 to i32
    %c0_i32_7 = arith.constant 0 : i32
    %14 = arith.cmpi ne, %13, %c0_i32_7 : i32
    scf.if %14 {
      %c0_10 = arith.constant 0 : index
      %c51 = arith.constant 51 : index
      %18 = vector.load %arg7[%c0_10, %c51] : memref<2x384xf32, #tpu.memory_space<vmem>>, vector<1x256xf32>
      %c1 = arith.constant 1 : index
      %c51_11 = arith.constant 51 : index
      %19 = vector.load %arg7[%c1, %c51_11] : memref<2x384xf32, #tpu.memory_space<vmem>>, vector<1x256xf32>
      %20 = arith.addf %18, %6 : vector<1x256xf32>
      %c0_12 = arith.constant 0 : index
      %c51_13 = arith.constant 51 : index
      %21 = vector.load %arg7[%c0_12, %c51_13] : memref<2x384xf32, #tpu.memory_space<vmem>>, vector<1x256xf32>
      tpu.vector_store %arg7[%c0_12, %c51_13], %20 {strides = array<i32>} : memref<2x384xf32, #tpu.memory_space<vmem>>, vector<1x256xf32>,
      %22 = arith.maximumf %19, %8 : vector<1x256xf32>
      %c1_14 = arith.constant 1 : index
      %c51_15 = arith.constant 51 : index
      %23 = vector.load %arg7[%c1_14, %c51_15] : memref<2x384xf32, #tpu.memory_space<vmem>>, vector<1x256xf32>
      tpu.vector_store %arg7[%c1_14, %c51_15], %22 {strides = array<i32>} : memref<2x384xf32, #tpu.memory_space<vmem>>, vector<1x256xf32>,
    } else {
    }
    %c0_i32_8 = arith.constant 0 : i32
    %15 = arith.cmpi eq, %arg1, %c0_i32_8 : i32
    %16 = arith.extui %15 : i1 to i32
    %c0_i32_9 = arith.constant 0 : i32
    %17 = arith.cmpi ne, %16, %c0_i32_9 : i32
    scf.if %17 {
      %c0_10 = arith.constant 0 : index
      %18 = memref.load %arg2[%c0_10] : memref<98xf32, #tpu.memory_space<smem>>
      %c1 = arith.constant 1 : index
      %19 = memref.load %arg2[%c1] : memref<98xf32, #tpu.memory_space<smem>>
      %c2 = arith.constant 2 : index
      %20 = memref.load %arg2[%c2] : memref<98xf32, #tpu.memory_space<smem>>
      %c3 = arith.constant 3 : index
      %21 = memref.load %arg2[%c3] : memref<98xf32, #tpu.memory_space<smem>>
      %c4 = arith.constant 4 : index
      %22 = memref.load %arg2[%c4] : memref<98xf32, #tpu.memory_space<smem>>
      %c5 = arith.constant 5 : index
      %23 = memref.load %arg2[%c5] : memref<98xf32, #tpu.memory_space<smem>>
      %c6 = arith.constant 6 : index
      %24 = memref.load %arg2[%c6] : memref<98xf32, #tpu.memory_space<smem>>
      %c7 = arith.constant 7 : index
      %25 = memref.load %arg2[%c7] : memref<98xf32, #tpu.memory_space<smem>>
      %c8 = arith.constant 8 : index
      %26 = memref.load %arg2[%c8] : memref<98xf32, #tpu.memory_space<smem>>
      %c9 = arith.constant 9 : index
      %27 = memref.load %arg2[%c9] : memref<98xf32, #tpu.memory_space<smem>>
      %c10 = arith.constant 10 : index
      %28 = memref.load %arg2[%c10] : memref<98xf32, #tpu.memory_space<smem>>
      %c11 = arith.constant 11 : index
      %29 = memref.load %arg2[%c11] : memref<98xf32, #tpu.memory_space<smem>>
      %c12 = arith.constant 12 : index
      %30 = memref.load %arg2[%c12] : memref<98xf32, #tpu.memory_space<smem>>
      %c13 = arith.constant 13 : index
      %31 = memref.load %arg2[%c13] : memref<98xf32, #tpu.memory_space<smem>>
      %c14 = arith.constant 14 : index
      %32 = memref.load %arg2[%c14] : memref<98xf32, #tpu.memory_space<smem>>
      %c15 = arith.constant 15 : index
      %33 = memref.load %arg2[%c15] : memref<98xf32, #tpu.memory_space<smem>>
      %c16 = arith.constant 16 : index
      %34 = memref.load %arg2[%c16] : memref<98xf32, #tpu.memory_space<smem>>
      %c17 = arith.constant 17 : index
      %35 = memref.load %arg2[%c17] : memref<98xf32, #tpu.memory_space<smem>>
      %c18 = arith.constant 18 : index
      %36 = memref.load %arg2[%c18] : memref<98xf32, #tpu.memory_space<smem>>
      %c19 = arith.constant 19 : index
      %37 = memref.load %arg2[%c19] : memref<98xf32, #tpu.memory_space<smem>>
      %c20 = arith.constant 20 : index
      %38 = memref.load %arg2[%c20] : memref<98xf32, #tpu.memory_space<smem>>
      %c21 = arith.constant 21 : index
      %39 = memref.load %arg2[%c21] : memref<98xf32, #tpu.memory_space<smem>>
      %c22 = arith.constant 22 : index
      %40 = memref.load %arg2[%c22] : memref<98xf32, #tpu.memory_space<smem>>
      %c23 = arith.constant 23 : index
      %41 = memref.load %arg2[%c23] : memref<98xf32, #tpu.memory_space<smem>>
      %c24 = arith.constant 24 : index
      %42 = memref.load %arg2[%c24] : memref<98xf32, #tpu.memory_space<smem>>
      %c25 = arith.constant 25 : index
      %43 = memref.load %arg2[%c25] : memref<98xf32, #tpu.memory_space<smem>>
      %c26 = arith.constant 26 : index
      %44 = memref.load %arg2[%c26] : memref<98xf32, #tpu.memory_space<smem>>
      %c27 = arith.constant 27 : index
      %45 = memref.load %arg2[%c27] : memref<98xf32, #tpu.memory_space<smem>>
      %c28 = arith.constant 28 : index
      %46 = memref.load %arg2[%c28] : memref<98xf32, #tpu.memory_space<smem>>
      %c29 = arith.constant 29 : index
      %47 = memref.load %arg2[%c29] : memref<98xf32, #tpu.memory_space<smem>>
      %c30 = arith.constant 30 : index
      %48 = memref.load %arg2[%c30] : memref<98xf32, #tpu.memory_space<smem>>
      %c31 = arith.constant 31 : index
      %49 = memref.load %arg2[%c31] : memref<98xf32, #tpu.memory_space<smem>>
      %c32 = arith.constant 32 : index
      %50 = memref.load %arg2[%c32] : memref<98xf32, #tpu.memory_space<smem>>
      %c33 = arith.constant 33 : index
      %51 = memref.load %arg2[%c33] : memref<98xf32, #tpu.memory_space<smem>>
      %c34 = arith.constant 34 : index
      %52 = memref.load %arg2[%c34] : memref<98xf32, #tpu.memory_space<smem>>
      %c35 = arith.constant 35 : index
      %53 = memref.load %arg2[%c35] : memref<98xf32, #tpu.memory_space<smem>>
      %c36 = arith.constant 36 : index
      %54 = memref.load %arg2[%c36] : memref<98xf32, #tpu.memory_space<smem>>
      %c37 = arith.constant 37 : index
      %55 = memref.load %arg2[%c37] : memref<98xf32, #tpu.memory_space<smem>>
      %c38 = arith.constant 38 : index
      %56 = memref.load %arg2[%c38] : memref<98xf32, #tpu.memory_space<smem>>
      %c39 = arith.constant 39 : index
      %57 = memref.load %arg2[%c39] : memref<98xf32, #tpu.memory_space<smem>>
      %c40 = arith.constant 40 : index
      %58 = memref.load %arg2[%c40] : memref<98xf32, #tpu.memory_space<smem>>
      %c41 = arith.constant 41 : index
      %59 = memref.load %arg2[%c41] : memref<98xf32, #tpu.memory_space<smem>>
      %c42 = arith.constant 42 : index
      %60 = memref.load %arg2[%c42] : memref<98xf32, #tpu.memory_space<smem>>
      %c43 = arith.constant 43 : index
      %61 = memref.load %arg2[%c43] : memref<98xf32, #tpu.memory_space<smem>>
      %c44 = arith.constant 44 : index
      %62 = memref.load %arg2[%c44] : memref<98xf32, #tpu.memory_space<smem>>
      %c45 = arith.constant 45 : index
      %63 = memref.load %arg2[%c45] : memref<98xf32, #tpu.memory_space<smem>>
      %c46 = arith.constant 46 : index
      %64 = memref.load %arg2[%c46] : memref<98xf32, #tpu.memory_space<smem>>
      %c47 = arith.constant 47 : index
      %65 = memref.load %arg2[%c47] : memref<98xf32, #tpu.memory_space<smem>>
      %c48 = arith.constant 48 : index
      %66 = memref.load %arg2[%c48] : memref<98xf32, #tpu.memory_space<smem>>
      %c49 = arith.constant 49 : index
      %67 = memref.load %arg2[%c49] : memref<98xf32, #tpu.memory_space<smem>>
      %c50 = arith.constant 50 : index
      %68 = memref.load %arg2[%c50] : memref<98xf32, #tpu.memory_space<smem>>
      %c51 = arith.constant 51 : index
      %69 = memref.load %arg2[%c51] : memref<98xf32, #tpu.memory_space<smem>>
      %c52 = arith.constant 52 : index
      %70 = memref.load %arg2[%c52] : memref<98xf32, #tpu.memory_space<smem>>
      %c53 = arith.constant 53 : index
      %71 = memref.load %arg2[%c53] : memref<98xf32, #tpu.memory_space<smem>>
      %c54 = arith.constant 54 : index
      %72 = memref.load %arg2[%c54] : memref<98xf32, #tpu.memory_space<smem>>
      %c55 = arith.constant 55 : index
      %73 = memref.load %arg2[%c55] : memref<98xf32, #tpu.memory_space<smem>>
      %c56 = arith.constant 56 : index
      %74 = memref.load %arg2[%c56] : memref<98xf32, #tpu.memory_space<smem>>
      %c57 = arith.constant 57 : index
      %75 = memref.load %arg2[%c57] : memref<98xf32, #tpu.memory_space<smem>>
      %c58 = arith.constant 58 : index
      %76 = memref.load %arg2[%c58] : memref<98xf32, #tpu.memory_space<smem>>
      %c59 = arith.constant 59 : index
      %77 = memref.load %arg2[%c59] : memref<98xf32, #tpu.memory_space<smem>>
      %c60 = arith.constant 60 : index
      %78 = memref.load %arg2[%c60] : memref<98xf32, #tpu.memory_space<smem>>
      %c61 = arith.constant 61 : index
      %79 = memref.load %arg2[%c61] : memref<98xf32, #tpu.memory_space<smem>>
      %c62 = arith.constant 62 : index
      %80 = memref.load %arg2[%c62] : memref<98xf32, #tpu.memory_space<smem>>
      %c63 = arith.constant 63 : index
      %81 = memref.load %arg2[%c63] : memref<98xf32, #tpu.memory_space<smem>>
      %c64 = arith.constant 64 : index
      %82 = memref.load %arg2[%c64] : memref<98xf32, #tpu.memory_space<smem>>
      %c65 = arith.constant 65 : index
      %83 = memref.load %arg2[%c65] : memref<98xf32, #tpu.memory_space<smem>>
      %c66 = arith.constant 66 : index
      %84 = memref.load %arg2[%c66] : memref<98xf32, #tpu.memory_space<smem>>
      %c67 = arith.constant 67 : index
      %85 = memref.load %arg2[%c67] : memref<98xf32, #tpu.memory_space<smem>>
      %c68 = arith.constant 68 : index
      %86 = memref.load %arg2[%c68] : memref<98xf32, #tpu.memory_space<smem>>
      %c69 = arith.constant 69 : index
      %87 = memref.load %arg2[%c69] : memref<98xf32, #tpu.memory_space<smem>>
      %c70 = arith.constant 70 : index
      %88 = memref.load %arg2[%c70] : memref<98xf32, #tpu.memory_space<smem>>
      %c71 = arith.constant 71 : index
      %89 = memref.load %arg2[%c71] : memref<98xf32, #tpu.memory_space<smem>>
      %c72 = arith.constant 72 : index
      %90 = memref.load %arg2[%c72] : memref<98xf32, #tpu.memory_space<smem>>
      %c73 = arith.constant 73 : index
      %91 = memref.load %arg2[%c73] : memref<98xf32, #tpu.memory_space<smem>>
      %c74 = arith.constant 74 : index
      %92 = memref.load %arg2[%c74] : memref<98xf32, #tpu.memory_space<smem>>
      %c75 = arith.constant 75 : index
      %93 = memref.load %arg2[%c75] : memref<98xf32, #tpu.memory_space<smem>>
      %c76 = arith.constant 76 : index
      %94 = memref.load %arg2[%c76] : memref<98xf32, #tpu.memory_space<smem>>
      %c77 = arith.constant 77 : index
      %95 = memref.load %arg2[%c77] : memref<98xf32, #tpu.memory_space<smem>>
      %c78 = arith.constant 78 : index
      %96 = memref.load %arg2[%c78] : memref<98xf32, #tpu.memory_space<smem>>
      %c79 = arith.constant 79 : index
      %97 = memref.load %arg2[%c79] : memref<98xf32, #tpu.memory_space<smem>>
      %c80 = arith.constant 80 : index
      %98 = memref.load %arg2[%c80] : memref<98xf32, #tpu.memory_space<smem>>
      %c81 = arith.constant 81 : index
      %99 = memref.load %arg2[%c81] : memref<98xf32, #tpu.memory_space<smem>>
      %c82 = arith.constant 82 : index
      %100 = memref.load %arg2[%c82] : memref<98xf32, #tpu.memory_space<smem>>
      %c83 = arith.constant 83 : index
      %101 = memref.load %arg2[%c83] : memref<98xf32, #tpu.memory_space<smem>>
      %c84 = arith.constant 84 : index
      %102 = memref.load %arg2[%c84] : memref<98xf32, #tpu.memory_space<smem>>
      %c85 = arith.constant 85 : index
      %103 = memref.load %arg2[%c85] : memref<98xf32, #tpu.memory_space<smem>>
      %c86 = arith.constant 86 : index
      %104 = memref.load %arg2[%c86] : memref<98xf32, #tpu.memory_space<smem>>
      %c87 = arith.constant 87 : index
      %105 = memref.load %arg2[%c87] : memref<98xf32, #tpu.memory_space<smem>>
      %c88 = arith.constant 88 : index
      %106 = memref.load %arg2[%c88] : memref<98xf32, #tpu.memory_space<smem>>
      %c89 = arith.constant 89 : index
      %107 = memref.load %arg2[%c89] : memref<98xf32, #tpu.memory_space<smem>>
      %c90 = arith.constant 90 : index
      %108 = memref.load %arg2[%c90] : memref<98xf32, #tpu.memory_space<smem>>
      %c91 = arith.constant 91 : index
      %109 = memref.load %arg2[%c91] : memref<98xf32, #tpu.memory_space<smem>>
      %c92 = arith.constant 92 : index
      %110 = memref.load %arg2[%c92] : memref<98xf32, #tpu.memory_space<smem>>
      %c93 = arith.constant 93 : index
      %111 = memref.load %arg2[%c93] : memref<98xf32, #tpu.memory_space<smem>>
      %c94 = arith.constant 94 : index
      %112 = memref.load %arg2[%c94] : memref<98xf32, #tpu.memory_space<smem>>
      %c95 = arith.constant 95 : index
      %113 = memref.load %arg2[%c95] : memref<98xf32, #tpu.memory_space<smem>>
      %c96 = arith.constant 96 : index
      %114 = memref.load %arg2[%c96] : memref<98xf32, #tpu.memory_space<smem>>
      %c97 = arith.constant 97 : index
      %115 = memref.load %arg2[%c97] : memref<98xf32, #tpu.memory_space<smem>>
      %c0_11 = arith.constant 0 : index
      %116 = memref.load %arg3[%c0_11] : memref<1xf32, #tpu.memory_space<smem>>
      %117 = vector.broadcast %116 : f32 to vector<1x256xf32>
      %c0_12 = arith.constant 0 : index
      %c0_13 = arith.constant 0 : index
      %118 = vector.load %arg4[%c0_12, %c0_13] : memref<1x256xi32, #tpu.memory_space<vmem>>, vector<1x256xi32>
      %c-3_i32 = arith.constant -3 : i32
      %119 = vector.broadcast %c-3_i32 : i32 to vector<1x256xi32>
      %120 = arith.addi %118, %119 : vector<1x256xi32>
      %c0_i32_14 = arith.constant 0 : i32
      %121 = vector.broadcast %c0_i32_14 : i32 to vector<1x256xi32>
      %122 = arith.cmpi sge, %120, %121 : vector<1x256xi32>
      %c-3_i32_15 = arith.constant -3 : i32
      %123 = vector.broadcast %c-3_i32_15 : i32 to vector<1x256xi32>
      %124 = arith.addi %118, %123 : vector<1x256xi32>
      %c16_i32 = arith.constant 16 : i32
      %125 = vector.broadcast %c16_i32 : i32 to vector<1x256xi32>
      %126 = arith.cmpi slt, %124, %125 : vector<1x256xi32>
      %127 = arith.andi %122, %126 : vector<1x256xi1>
      %c-2_i32 = arith.constant -2 : i32
      %128 = vector.broadcast %c-2_i32 : i32 to vector<1x256xi32>
      %129 = arith.addi %118, %128 : vector<1x256xi32>
      %c0_i32_16 = arith.constant 0 : i32
      %130 = vector.broadcast %c0_i32_16 : i32 to vector<1x256xi32>
      %131 = arith.cmpi sge, %129, %130 : vector<1x256xi32>
      %c-2_i32_17 = arith.constant -2 : i32
      %132 = vector.broadcast %c-2_i32_17 : i32 to vector<1x256xi32>
      %133 = arith.addi %118, %132 : vector<1x256xi32>
      %c16_i32_18 = arith.constant 16 : i32
      %134 = vector.broadcast %c16_i32_18 : i32 to vector<1x256xi32>
      %135 = arith.cmpi slt, %133, %134 : vector<1x256xi32>
      %136 = arith.andi %131, %135 : vector<1x256xi1>
      %c-1_i32 = arith.constant -1 : i32
      %137 = vector.broadcast %c-1_i32 : i32 to vector<1x256xi32>
      %138 = arith.addi %118, %137 : vector<1x256xi32>
      %c0_i32_19 = arith.constant 0 : i32
      %139 = vector.broadcast %c0_i32_19 : i32 to vector<1x256xi32>
      %140 = arith.cmpi sge, %138, %139 : vector<1x256xi32>
      %c-1_i32_20 = arith.constant -1 : i32
      %141 = vector.broadcast %c-1_i32_20 : i32 to vector<1x256xi32>
      %142 = arith.addi %118, %141 : vector<1x256xi32>
      %c16_i32_21 = arith.constant 16 : i32
      %143 = vector.broadcast %c16_i32_21 : i32 to vector<1x256xi32>
      %144 = arith.cmpi slt, %142, %143 : vector<1x256xi32>
      %145 = arith.andi %140, %144 : vector<1x256xi1>
      %c1_i32 = arith.constant 1 : i32
      %146 = vector.broadcast %c1_i32 : i32 to vector<1x256xi32>
      %147 = arith.addi %118, %146 : vector<1x256xi32>
      %c0_i32_22 = arith.constant 0 : i32
      %148 = vector.broadcast %c0_i32_22 : i32 to vector<1x256xi32>
      %149 = arith.cmpi sge, %147, %148 : vector<1x256xi32>
      %c1_i32_23 = arith.constant 1 : i32
      %150 = vector.broadcast %c1_i32_23 : i32 to vector<1x256xi32>
      %151 = arith.addi %118, %150 : vector<1x256xi32>
      %c16_i32_24 = arith.constant 16 : i32
      %152 = vector.broadcast %c16_i32_24 : i32 to vector<1x256xi32>
      %153 = arith.cmpi slt, %151, %152 : vector<1x256xi32>
      %154 = arith.andi %149, %153 : vector<1x256xi1>
      %c2_i32 = arith.constant 2 : i32
      %155 = vector.broadcast %c2_i32 : i32 to vector<1x256xi32>
      %156 = arith.addi %118, %155 : vector<1x256xi32>
      %c0_i32_25 = arith.constant 0 : i32
      %157 = vector.broadcast %c0_i32_25 : i32 to vector<1x256xi32>
      %158 = arith.cmpi sge, %156, %157 : vector<1x256xi32>
      %c2_i32_26 = arith.constant 2 : i32
      %159 = vector.broadcast %c2_i32_26 : i32 to vector<1x256xi32>
      %160 = arith.addi %118, %159 : vector<1x256xi32>
      %c16_i32_27 = arith.constant 16 : i32
      %161 = vector.broadcast %c16_i32_27 : i32 to vector<1x256xi32>
      %162 = arith.cmpi slt, %160, %161 : vector<1x256xi32>
      %163 = arith.andi %158, %162 : vector<1x256xi1>
      %c3_i32 = arith.constant 3 : i32
      %164 = vector.broadcast %c3_i32 : i32 to vector<1x256xi32>
      %165 = arith.addi %118, %164 : vector<1x256xi32>
      %c0_i32_28 = arith.constant 0 : i32
      %166 = vector.broadcast %c0_i32_28 : i32 to vector<1x256xi32>
      %167 = arith.cmpi sge, %165, %166 : vector<1x256xi32>
      %c3_i32_29 = arith.constant 3 : i32
      %168 = vector.broadcast %c3_i32_29 : i32 to vector<1x256xi32>
      %169 = arith.addi %118, %168 : vector<1x256xi32>
      %c16_i32_30 = arith.constant 16 : i32
      %170 = vector.broadcast %c16_i32_30 : i32 to vector<1x256xi32>
      %171 = arith.cmpi slt, %169, %170 : vector<1x256xi32>
      %172 = arith.andi %167, %171 : vector<1x256xi1>
      %cst_31 = arith.constant 0.000000e+00 : f32
      %173 = vector.broadcast %cst_31 : f32 to vector<1x256xf32>
      %c0_32 = arith.constant 0 : index
      %c0_33 = arith.constant 0 : index
      %174 = vector.load %arg7[%c0_32, %c0_33] : memref<2x384xf32, #tpu.memory_space<vmem>>, vector<1x256xf32>
      %c1_34 = arith.constant 1 : index
      %c0_35 = arith.constant 0 : index
      %175 = vector.load %arg7[%c1_34, %c0_35] : memref<2x384xf32, #tpu.memory_space<vmem>>, vector<1x256xf32>
      %176 = vector.broadcast %18 : f32 to vector<1x256xf32>
      %177 = arith.mulf %176, %174 : vector<1x256xf32>
      %178 = vector.broadcast %67 : f32 to vector<1x256xf32>
      %179 = arith.mulf %178, %175 : vector<1x256xf32>
      %180 = arith.addf %177, %179 : vector<1x256xf32>
      %c0_36 = arith.constant 0 : index
      %c16_37 = arith.constant 16 : index
      %181 = vector.load %arg7[%c0_36, %c16_37] : memref<2x384xf32, #tpu.memory_space<vmem>>, vector<1x256xf32>
      %c1_38 = arith.constant 1 : index
      %c16_39 = arith.constant 16 : index
      %182 = vector.load %arg7[%c1_38, %c16_39] : memref<2x384xf32, #tpu.memory_space<vmem>>, vector<1x256xf32>
      %183 = vector.broadcast %25 : f32 to vector<1x256xf32>
      %184 = arith.mulf %183, %181 : vector<1x256xf32>
      %185 = vector.broadcast %74 : f32 to vector<1x256xf32>
      %186 = arith.mulf %185, %182 : vector<1x256xf32>
      %187 = arith.addf %184, %186 : vector<1x256xf32>
      %188 = arith.addf %180, %187 : vector<1x256xf32>
      %c0_40 = arith.constant 0 : index
      %c32_41 = arith.constant 32 : index
      %189 = vector.load %arg7[%c0_40, %c32_41] : memref<2x384xf32, #tpu.memory_space<vmem>>, vector<1x256xf32>
      %c1_42 = arith.constant 1 : index
      %c32_43 = arith.constant 32 : index
      %190 = vector.load %arg7[%c1_42, %c32_43] : memref<2x384xf32, #tpu.memory_space<vmem>>, vector<1x256xf32>
      %191 = vector.broadcast %32 : f32 to vector<1x256xf32>
      %192 = arith.mulf %191, %189 : vector<1x256xf32>
      %193 = vector.broadcast %81 : f32 to vector<1x256xf32>
      %194 = arith.mulf %193, %190 : vector<1x256xf32>
      %195 = arith.addf %192, %194 : vector<1x256xf32>
      %196 = arith.addf %188, %195 : vector<1x256xf32>
      %c0_44 = arith.constant 0 : index
      %c48_45 = arith.constant 48 : index
      %197 = vector.load %arg7[%c0_44, %c48_45] : memref<2x384xf32, #tpu.memory_space<vmem>>, vector<1x256xf32>
      %c1_46 = arith.constant 1 : index
      %c48_47 = arith.constant 48 : index
      %198 = vector.load %arg7[%c1_46, %c48_47] : memref<2x384xf32, #tpu.memory_space<vmem>>, vector<1x256xf32>
      %199 = vector.broadcast %39 : f32 to vector<1x256xf32>
      %200 = arith.mulf %199, %197 : vector<1x256xf32>
      %201 = vector.broadcast %88 : f32 to vector<1x256xf32>
      %202 = arith.mulf %201, %198 : vector<1x256xf32>
      %203 = arith.addf %200, %202 : vector<1x256xf32>
      %204 = arith.addf %196, %203 : vector<1x256xf32>
      %c0_48 = arith.constant 0 : index
      %c64_49 = arith.constant 64 : index
      %205 = vector.load %arg7[%c0_48, %c64_49] : memref<2x384xf32, #tpu.memory_space<vmem>>, vector<1x256xf32>
      %c1_50 = arith.constant 1 : index
      %c64_51 = arith.constant 64 : index
      %206 = vector.load %arg7[%c1_50, %c64_51] : memref<2x384xf32, #tpu.memory_space<vmem>>, vector<1x256xf32>
      %207 = vector.broadcast %46 : f32 to vector<1x256xf32>
      %208 = arith.mulf %207, %205 : vector<1x256xf32>
      %209 = vector.broadcast %95 : f32 to vector<1x256xf32>
      %210 = arith.mulf %209, %206 : vector<1x256xf32>
      %211 = arith.addf %208, %210 : vector<1x256xf32>
      %212 = arith.addf %204, %211 : vector<1x256xf32>
      %c0_52 = arith.constant 0 : index
      %c80_53 = arith.constant 80 : index
      %213 = vector.load %arg7[%c0_52, %c80_53] : memref<2x384xf32, #tpu.memory_space<vmem>>, vector<1x256xf32>
      %c1_54 = arith.constant 1 : index
      %c80_55 = arith.constant 80 : index
      %214 = vector.load %arg7[%c1_54, %c80_55] : memref<2x384xf32, #tpu.memory_space<vmem>>, vector<1x256xf32>
      %215 = vector.broadcast %53 : f32 to vector<1x256xf32>
      %216 = arith.mulf %215, %213 : vector<1x256xf32>
      %217 = vector.broadcast %102 : f32 to vector<1x256xf32>
      %218 = arith.mulf %217, %214 : vector<1x256xf32>
      %219 = arith.addf %216, %218 : vector<1x256xf32>
      %220 = arith.addf %212, %219 : vector<1x256xf32>
      %c0_56 = arith.constant 0 : index
      %c96_57 = arith.constant 96 : index
      %221 = vector.load %arg7[%c0_56, %c96_57] : memref<2x384xf32, #tpu.memory_space<vmem>>, vector<1x256xf32>
      %c1_58 = arith.constant 1 : index
      %c96_59 = arith.constant 96 : index
      %222 = vector.load %arg7[%c1_58, %c96_59] : memref<2x384xf32, #tpu.memory_space<vmem>>, vector<1x256xf32>
      %223 = vector.broadcast %60 : f32 to vector<1x256xf32>
      %224 = arith.mulf %223, %221 : vector<1x256xf32>
      %225 = vector.broadcast %109 : f32 to vector<1x256xf32>
      %226 = arith.mulf %225, %222 : vector<1x256xf32>
      %227 = arith.addf %224, %226 : vector<1x256xf32>
      %228 = arith.addf %220, %227 : vector<1x256xf32>
      %cst_60 = arith.constant 0.000000e+00 : f32
      %229 = vector.broadcast %cst_60 : f32 to vector<1x256xf32>
      %230 = arith.select %127, %228, %229 : vector<1x256xi1>, vector<1x256xf32>
      %231 = arith.addf %117, %230 : vector<1x256xf32>
      %c0_61 = arith.constant 0 : index
      %c1_62 = arith.constant 1 : index
      %232 = vector.load %arg7[%c0_61, %c1_62] : memref<2x384xf32, #tpu.memory_space<vmem>>, vector<1x256xf32>
      %c1_63 = arith.constant 1 : index
      %c1_64 = arith.constant 1 : index
      %233 = vector.load %arg7[%c1_63, %c1_64] : memref<2x384xf32, #tpu.memory_space<vmem>>, vector<1x256xf32>
      %234 = vector.broadcast %19 : f32 to vector<1x256xf32>
      %235 = arith.mulf %234, %232 : vector<1x256xf32>
      %236 = vector.broadcast %68 : f32 to vector<1x256xf32>
      %237 = arith.mulf %236, %233 : vector<1x256xf32>
      %238 = arith.addf %235, %237 : vector<1x256xf32>
      %c0_65 = arith.constant 0 : index
      %c17_66 = arith.constant 17 : index
      %239 = vector.load %arg7[%c0_65, %c17_66] : memref<2x384xf32, #tpu.memory_space<vmem>>, vector<1x256xf32>
      %c1_67 = arith.constant 1 : index
      %c17_68 = arith.constant 17 : index
      %240 = vector.load %arg7[%c1_67, %c17_68] : memref<2x384xf32, #tpu.memory_space<vmem>>, vector<1x256xf32>
      %241 = vector.broadcast %26 : f32 to vector<1x256xf32>
      %242 = arith.mulf %241, %239 : vector<1x256xf32>
      %243 = vector.broadcast %75 : f32 to vector<1x256xf32>
      %244 = arith.mulf %243, %240 : vector<1x256xf32>
      %245 = arith.addf %242, %244 : vector<1x256xf32>
      %246 = arith.addf %238, %245 : vector<1x256xf32>
      %c0_69 = arith.constant 0 : index
      %c33_70 = arith.constant 33 : index
      %247 = vector.load %arg7[%c0_69, %c33_70] : memref<2x384xf32, #tpu.memory_space<vmem>>, vector<1x256xf32>
      %c1_71 = arith.constant 1 : index
      %c33_72 = arith.constant 33 : index
      %248 = vector.load %arg7[%c1_71, %c33_72] : memref<2x384xf32, #tpu.memory_space<vmem>>, vector<1x256xf32>
      %249 = vector.broadcast %33 : f32 to vector<1x256xf32>
      %250 = arith.mulf %249, %247 : vector<1x256xf32>
      %251 = vector.broadcast %82 : f32 to vector<1x256xf32>
      %252 = arith.mulf %251, %248 : vector<1x256xf32>
      %253 = arith.addf %250, %252 : vector<1x256xf32>
      %254 = arith.addf %246, %253 : vector<1x256xf32>
      %c0_73 = arith.constant 0 : index
      %c49_74 = arith.constant 49 : index
      %255 = vector.load %arg7[%c0_73, %c49_74] : memref<2x384xf32, #tpu.memory_space<vmem>>, vector<1x256xf32>
      %c1_75 = arith.constant 1 : index
      %c49_76 = arith.constant 49 : index
      %256 = vector.load %arg7[%c1_75, %c49_76] : memref<2x384xf32, #tpu.memory_space<vmem>>, vector<1x256xf32>
      %257 = vector.broadcast %40 : f32 to vector<1x256xf32>
      %258 = arith.mulf %257, %255 : vector<1x256xf32>
      %259 = vector.broadcast %89 : f32 to vector<1x256xf32>
      %260 = arith.mulf %259, %256 : vector<1x256xf32>
      %261 = arith.addf %258, %260 : vector<1x256xf32>
      %262 = arith.addf %254, %261 : vector<1x256xf32>
      %c0_77 = arith.constant 0 : index
      %c65_78 = arith.constant 65 : index
      %263 = vector.load %arg7[%c0_77, %c65_78] : memref<2x384xf32, #tpu.memory_space<vmem>>, vector<1x256xf32>
      %c1_79 = arith.constant 1 : index
      %c65_80 = arith.constant 65 : index
      %264 = vector.load %arg7[%c1_79, %c65_80] : memref<2x384xf32, #tpu.memory_space<vmem>>, vector<1x256xf32>
      %265 = vector.broadcast %47 : f32 to vector<1x256xf32>
      %266 = arith.mulf %265, %263 : vector<1x256xf32>
      %267 = vector.broadcast %96 : f32 to vector<1x256xf32>
      %268 = arith.mulf %267, %264 : vector<1x256xf32>
      %269 = arith.addf %266, %268 : vector<1x256xf32>
      %270 = arith.addf %262, %269 : vector<1x256xf32>
      %c0_81 = arith.constant 0 : index
      %c81_82 = arith.constant 81 : index
      %271 = vector.load %arg7[%c0_81, %c81_82] : memref<2x384xf32, #tpu.memory_space<vmem>>, vector<1x256xf32>
      %c1_83 = arith.constant 1 : index
      %c81_84 = arith.constant 81 : index
      %272 = vector.load %arg7[%c1_83, %c81_84] : memref<2x384xf32, #tpu.memory_space<vmem>>, vector<1x256xf32>
      %273 = vector.broadcast %54 : f32 to vector<1x256xf32>
      %274 = arith.mulf %273, %271 : vector<1x256xf32>
      %275 = vector.broadcast %103 : f32 to vector<1x256xf32>
      %276 = arith.mulf %275, %272 : vector<1x256xf32>
      %277 = arith.addf %274, %276 : vector<1x256xf32>
      %278 = arith.addf %270, %277 : vector<1x256xf32>
      %c0_85 = arith.constant 0 : index
      %c97_86 = arith.constant 97 : index
      %279 = vector.load %arg7[%c0_85, %c97_86] : memref<2x384xf32, #tpu.memory_space<vmem>>, vector<1x256xf32>
      %c1_87 = arith.constant 1 : index
      %c97_88 = arith.constant 97 : index
      %280 = vector.load %arg7[%c1_87, %c97_88] : memref<2x384xf32, #tpu.memory_space<vmem>>, vector<1x256xf32>
      %281 = vector.broadcast %61 : f32 to vector<1x256xf32>
      %282 = arith.mulf %281, %279 : vector<1x256xf32>
      %283 = vector.broadcast %110 : f32 to vector<1x256xf32>
      %284 = arith.mulf %283, %280 : vector<1x256xf32>
      %285 = arith.addf %282, %284 : vector<1x256xf32>
      %286 = arith.addf %278, %285 : vector<1x256xf32>
      %cst_89 = arith.constant 0.000000e+00 : f32
      %287 = vector.broadcast %cst_89 : f32 to vector<1x256xf32>
      %288 = arith.select %136, %286, %287 : vector<1x256xi1>, vector<1x256xf32>
      %289 = arith.addf %173, %288 : vector<1x256xf32>
      %c0_90 = arith.constant 0 : index
      %c2_91 = arith.constant 2 : index
      %290 = vector.load %arg7[%c0_90, %c2_91] : memref<2x384xf32, #tpu.memory_space<vmem>>, vector<1x256xf32>
      %c1_92 = arith.constant 1 : index
      %c2_93 = arith.constant 2 : index
      %291 = vector.load %arg7[%c1_92, %c2_93] : memref<2x384xf32, #tpu.memory_space<vmem>>, vector<1x256xf32>
      %292 = vector.broadcast %20 : f32 to vector<1x256xf32>
      %293 = arith.mulf %292, %290 : vector<1x256xf32>
      %294 = vector.broadcast %69 : f32 to vector<1x256xf32>
      %295 = arith.mulf %294, %291 : vector<1x256xf32>
      %296 = arith.addf %293, %295 : vector<1x256xf32>
      %c0_94 = arith.constant 0 : index
      %c18_95 = arith.constant 18 : index
      %297 = vector.load %arg7[%c0_94, %c18_95] : memref<2x384xf32, #tpu.memory_space<vmem>>, vector<1x256xf32>
      %c1_96 = arith.constant 1 : index
      %c18_97 = arith.constant 18 : index
      %298 = vector.load %arg7[%c1_96, %c18_97] : memref<2x384xf32, #tpu.memory_space<vmem>>, vector<1x256xf32>
      %299 = vector.broadcast %27 : f32 to vector<1x256xf32>
      %300 = arith.mulf %299, %297 : vector<1x256xf32>
      %301 = vector.broadcast %76 : f32 to vector<1x256xf32>
      %302 = arith.mulf %301, %298 : vector<1x256xf32>
      %303 = arith.addf %300, %302 : vector<1x256xf32>
      %304 = arith.addf %296, %303 : vector<1x256xf32>
      %c0_98 = arith.constant 0 : index
      %c34_99 = arith.constant 34 : index
      %305 = vector.load %arg7[%c0_98, %c34_99] : memref<2x384xf32, #tpu.memory_space<vmem>>, vector<1x256xf32>
      %c1_100 = arith.constant 1 : index
      %c34_101 = arith.constant 34 : index
      %306 = vector.load %arg7[%c1_100, %c34_101] : memref<2x384xf32, #tpu.memory_space<vmem>>, vector<1x256xf32>
      %307 = vector.broadcast %34 : f32 to vector<1x256xf32>
      %308 = arith.mulf %307, %305 : vector<1x256xf32>
      %309 = vector.broadcast %83 : f32 to vector<1x256xf32>
      %310 = arith.mulf %309, %306 : vector<1x256xf32>
      %311 = arith.addf %308, %310 : vector<1x256xf32>
      %312 = arith.addf %304, %311 : vector<1x256xf32>
      %c0_102 = arith.constant 0 : index
      %c50_103 = arith.constant 50 : index
      %313 = vector.load %arg7[%c0_102, %c50_103] : memref<2x384xf32, #tpu.memory_space<vmem>>, vector<1x256xf32>
      %c1_104 = arith.constant 1 : index
      %c50_105 = arith.constant 50 : index
      %314 = vector.load %arg7[%c1_104, %c50_105] : memref<2x384xf32, #tpu.memory_space<vmem>>, vector<1x256xf32>
      %315 = vector.broadcast %41 : f32 to vector<1x256xf32>
      %316 = arith.mulf %315, %313 : vector<1x256xf32>
      %317 = vector.broadcast %90 : f32 to vector<1x256xf32>
      %318 = arith.mulf %317, %314 : vector<1x256xf32>
      %319 = arith.addf %316, %318 : vector<1x256xf32>
      %320 = arith.addf %312, %319 : vector<1x256xf32>
      %c0_106 = arith.constant 0 : index
      %c66_107 = arith.constant 66 : index
      %321 = vector.load %arg7[%c0_106, %c66_107] : memref<2x384xf32, #tpu.memory_space<vmem>>, vector<1x256xf32>
      %c1_108 = arith.constant 1 : index
      %c66_109 = arith.constant 66 : index
      %322 = vector.load %arg7[%c1_108, %c66_109] : memref<2x384xf32, #tpu.memory_space<vmem>>, vector<1x256xf32>
      %323 = vector.broadcast %48 : f32 to vector<1x256xf32>
      %324 = arith.mulf %323, %321 : vector<1x256xf32>
      %325 = vector.broadcast %97 : f32 to vector<1x256xf32>
      %326 = arith.mulf %325, %322 : vector<1x256xf32>
      %327 = arith.addf %324, %326 : vector<1x256xf32>
      %328 = arith.addf %320, %327 : vector<1x256xf32>
      %c0_110 = arith.constant 0 : index
      %c82_111 = arith.constant 82 : index
      %329 = vector.load %arg7[%c0_110, %c82_111] : memref<2x384xf32, #tpu.memory_space<vmem>>, vector<1x256xf32>
      %c1_112 = arith.constant 1 : index
      %c82_113 = arith.constant 82 : index
      %330 = vector.load %arg7[%c1_112, %c82_113] : memref<2x384xf32, #tpu.memory_space<vmem>>, vector<1x256xf32>
      %331 = vector.broadcast %55 : f32 to vector<1x256xf32>
      %332 = arith.mulf %331, %329 : vector<1x256xf32>
      %333 = vector.broadcast %104 : f32 to vector<1x256xf32>
      %334 = arith.mulf %333, %330 : vector<1x256xf32>
      %335 = arith.addf %332, %334 : vector<1x256xf32>
      %336 = arith.addf %328, %335 : vector<1x256xf32>
      %c0_114 = arith.constant 0 : index
      %c98 = arith.constant 98 : index
      %337 = vector.load %arg7[%c0_114, %c98] : memref<2x384xf32, #tpu.memory_space<vmem>>, vector<1x256xf32>
      %c1_115 = arith.constant 1 : index
      %c98_116 = arith.constant 98 : index
      %338 = vector.load %arg7[%c1_115, %c98_116] : memref<2x384xf32, #tpu.memory_space<vmem>>, vector<1x256xf32>
      %339 = vector.broadcast %62 : f32 to vector<1x256xf32>
      %340 = arith.mulf %339, %337 : vector<1x256xf32>
      %341 = vector.broadcast %111 : f32 to vector<1x256xf32>
      %342 = arith.mulf %341, %338 : vector<1x256xf32>
      %343 = arith.addf %340, %342 : vector<1x256xf32>
      %344 = arith.addf %336, %343 : vector<1x256xf32>
      %cst_117 = arith.constant 0.000000e+00 : f32
      %345 = vector.broadcast %cst_117 : f32 to vector<1x256xf32>
      %346 = arith.select %145, %344, %345 : vector<1x256xi1>, vector<1x256xf32>
      %347 = arith.addf %231, %346 : vector<1x256xf32>
      %c0_118 = arith.constant 0 : index
      %c3_119 = arith.constant 3 : index
      %348 = vector.load %arg7[%c0_118, %c3_119] : memref<2x384xf32, #tpu.memory_space<vmem>>, vector<1x256xf32>
      %c1_120 = arith.constant 1 : index
      %c3_121 = arith.constant 3 : index
      %349 = vector.load %arg7[%c1_120, %c3_121] : memref<2x384xf32, #tpu.memory_space<vmem>>, vector<1x256xf32>
      %350 = vector.broadcast %21 : f32 to vector<1x256xf32>
      %351 = arith.mulf %350, %348 : vector<1x256xf32>
      %352 = vector.broadcast %70 : f32 to vector<1x256xf32>
      %353 = arith.mulf %352, %349 : vector<1x256xf32>
      %354 = arith.addf %351, %353 : vector<1x256xf32>
      %c0_122 = arith.constant 0 : index
      %c19_123 = arith.constant 19 : index
      %355 = vector.load %arg7[%c0_122, %c19_123] : memref<2x384xf32, #tpu.memory_space<vmem>>, vector<1x256xf32>
      %c1_124 = arith.constant 1 : index
      %c19_125 = arith.constant 19 : index
      %356 = vector.load %arg7[%c1_124, %c19_125] : memref<2x384xf32, #tpu.memory_space<vmem>>, vector<1x256xf32>
      %357 = vector.broadcast %28 : f32 to vector<1x256xf32>
      %358 = arith.mulf %357, %355 : vector<1x256xf32>
      %359 = vector.broadcast %77 : f32 to vector<1x256xf32>
      %360 = arith.mulf %359, %356 : vector<1x256xf32>
      %361 = arith.addf %358, %360 : vector<1x256xf32>
      %362 = arith.addf %354, %361 : vector<1x256xf32>
      %c0_126 = arith.constant 0 : index
      %c35_127 = arith.constant 35 : index
      %363 = vector.load %arg7[%c0_126, %c35_127] : memref<2x384xf32, #tpu.memory_space<vmem>>, vector<1x256xf32>
      %c1_128 = arith.constant 1 : index
      %c35_129 = arith.constant 35 : index
      %364 = vector.load %arg7[%c1_128, %c35_129] : memref<2x384xf32, #tpu.memory_space<vmem>>, vector<1x256xf32>
      %365 = vector.broadcast %35 : f32 to vector<1x256xf32>
      %366 = arith.mulf %365, %363 : vector<1x256xf32>
      %367 = vector.broadcast %84 : f32 to vector<1x256xf32>
      %368 = arith.mulf %367, %364 : vector<1x256xf32>
      %369 = arith.addf %366, %368 : vector<1x256xf32>
      %370 = arith.addf %362, %369 : vector<1x256xf32>
      %c0_130 = arith.constant 0 : index
      %c51_131 = arith.constant 51 : index
      %371 = vector.load %arg7[%c0_130, %c51_131] : memref<2x384xf32, #tpu.memory_space<vmem>>, vector<1x256xf32>
      %c1_132 = arith.constant 1 : index
      %c51_133 = arith.constant 51 : index
      %372 = vector.load %arg7[%c1_132, %c51_133] : memref<2x384xf32, #tpu.memory_space<vmem>>, vector<1x256xf32>
      %373 = vector.broadcast %42 : f32 to vector<1x256xf32>
      %374 = arith.mulf %373, %371 : vector<1x256xf32>
      %375 = vector.broadcast %91 : f32 to vector<1x256xf32>
      %376 = arith.mulf %375, %372 : vector<1x256xf32>
      %377 = arith.addf %374, %376 : vector<1x256xf32>
      %378 = arith.addf %370, %377 : vector<1x256xf32>
      %c0_134 = arith.constant 0 : index
      %c67_135 = arith.constant 67 : index
      %379 = vector.load %arg7[%c0_134, %c67_135] : memref<2x384xf32, #tpu.memory_space<vmem>>, vector<1x256xf32>
      %c1_136 = arith.constant 1 : index
      %c67_137 = arith.constant 67 : index
      %380 = vector.load %arg7[%c1_136, %c67_137] : memref<2x384xf32, #tpu.memory_space<vmem>>, vector<1x256xf32>
      %381 = vector.broadcast %49 : f32 to vector<1x256xf32>
      %382 = arith.mulf %381, %379 : vector<1x256xf32>
      %383 = vector.broadcast %98 : f32 to vector<1x256xf32>
      %384 = arith.mulf %383, %380 : vector<1x256xf32>
      %385 = arith.addf %382, %384 : vector<1x256xf32>
      %386 = arith.addf %378, %385 : vector<1x256xf32>
      %c0_138 = arith.constant 0 : index
      %c83_139 = arith.constant 83 : index
      %387 = vector.load %arg7[%c0_138, %c83_139] : memref<2x384xf32, #tpu.memory_space<vmem>>, vector<1x256xf32>
      %c1_140 = arith.constant 1 : index
      %c83_141 = arith.constant 83 : index
      %388 = vector.load %arg7[%c1_140, %c83_141] : memref<2x384xf32, #tpu.memory_space<vmem>>, vector<1x256xf32>
      %389 = vector.broadcast %56 : f32 to vector<1x256xf32>
      %390 = arith.mulf %389, %387 : vector<1x256xf32>
      %391 = vector.broadcast %105 : f32 to vector<1x256xf32>
      %392 = arith.mulf %391, %388 : vector<1x256xf32>
      %393 = arith.addf %390, %392 : vector<1x256xf32>
      %394 = arith.addf %386, %393 : vector<1x256xf32>
      %c0_142 = arith.constant 0 : index
      %c99 = arith.constant 99 : index
      %395 = vector.load %arg7[%c0_142, %c99] : memref<2x384xf32, #tpu.memory_space<vmem>>, vector<1x256xf32>
      %c1_143 = arith.constant 1 : index
      %c99_144 = arith.constant 99 : index
      %396 = vector.load %arg7[%c1_143, %c99_144] : memref<2x384xf32, #tpu.memory_space<vmem>>, vector<1x256xf32>
      %397 = vector.broadcast %63 : f32 to vector<1x256xf32>
      %398 = arith.mulf %397, %395 : vector<1x256xf32>
      %399 = vector.broadcast %112 : f32 to vector<1x256xf32>
      %400 = arith.mulf %399, %396 : vector<1x256xf32>
      %401 = arith.addf %398, %400 : vector<1x256xf32>
      %402 = arith.addf %394, %401 : vector<1x256xf32>
      %403 = arith.addf %289, %402 : vector<1x256xf32>
      %c0_145 = arith.constant 0 : index
      %c4_146 = arith.constant 4 : index
      %404 = vector.load %arg7[%c0_145, %c4_146] : memref<2x384xf32, #tpu.memory_space<vmem>>, vector<1x256xf32>
      %c1_147 = arith.constant 1 : index
      %c4_148 = arith.constant 4 : index
      %405 = vector.load %arg7[%c1_147, %c4_148] : memref<2x384xf32, #tpu.memory_space<vmem>>, vector<1x256xf32>
      %406 = vector.broadcast %22 : f32 to vector<1x256xf32>
      %407 = arith.mulf %406, %404 : vector<1x256xf32>
      %408 = vector.broadcast %71 : f32 to vector<1x256xf32>
      %409 = arith.mulf %408, %405 : vector<1x256xf32>
      %410 = arith.addf %407, %409 : vector<1x256xf32>
      %c0_149 = arith.constant 0 : index
      %c20_150 = arith.constant 20 : index
      %411 = vector.load %arg7[%c0_149, %c20_150] : memref<2x384xf32, #tpu.memory_space<vmem>>, vector<1x256xf32>
      %c1_151 = arith.constant 1 : index
      %c20_152 = arith.constant 20 : index
      %412 = vector.load %arg7[%c1_151, %c20_152] : memref<2x384xf32, #tpu.memory_space<vmem>>, vector<1x256xf32>
      %413 = vector.broadcast %29 : f32 to vector<1x256xf32>
      %414 = arith.mulf %413, %411 : vector<1x256xf32>
      %415 = vector.broadcast %78 : f32 to vector<1x256xf32>
      %416 = arith.mulf %415, %412 : vector<1x256xf32>
      %417 = arith.addf %414, %416 : vector<1x256xf32>
      %418 = arith.addf %410, %417 : vector<1x256xf32>
      %c0_153 = arith.constant 0 : index
      %c36_154 = arith.constant 36 : index
      %419 = vector.load %arg7[%c0_153, %c36_154] : memref<2x384xf32, #tpu.memory_space<vmem>>, vector<1x256xf32>
      %c1_155 = arith.constant 1 : index
      %c36_156 = arith.constant 36 : index
      %420 = vector.load %arg7[%c1_155, %c36_156] : memref<2x384xf32, #tpu.memory_space<vmem>>, vector<1x256xf32>
      %421 = vector.broadcast %36 : f32 to vector<1x256xf32>
      %422 = arith.mulf %421, %419 : vector<1x256xf32>
      %423 = vector.broadcast %85 : f32 to vector<1x256xf32>
      %424 = arith.mulf %423, %420 : vector<1x256xf32>
      %425 = arith.addf %422, %424 : vector<1x256xf32>
      %426 = arith.addf %418, %425 : vector<1x256xf32>
      %c0_157 = arith.constant 0 : index
      %c52_158 = arith.constant 52 : index
      %427 = vector.load %arg7[%c0_157, %c52_158] : memref<2x384xf32, #tpu.memory_space<vmem>>, vector<1x256xf32>
      %c1_159 = arith.constant 1 : index
      %c52_160 = arith.constant 52 : index
      %428 = vector.load %arg7[%c1_159, %c52_160] : memref<2x384xf32, #tpu.memory_space<vmem>>, vector<1x256xf32>
      %429 = vector.broadcast %43 : f32 to vector<1x256xf32>
      %430 = arith.mulf %429, %427 : vector<1x256xf32>
      %431 = vector.broadcast %92 : f32 to vector<1x256xf32>
      %432 = arith.mulf %431, %428 : vector<1x256xf32>
      %433 = arith.addf %430, %432 : vector<1x256xf32>
      %434 = arith.addf %426, %433 : vector<1x256xf32>
      %c0_161 = arith.constant 0 : index
      %c68_162 = arith.constant 68 : index
      %435 = vector.load %arg7[%c0_161, %c68_162] : memref<2x384xf32, #tpu.memory_space<vmem>>, vector<1x256xf32>
      %c1_163 = arith.constant 1 : index
      %c68_164 = arith.constant 68 : index
      %436 = vector.load %arg7[%c1_163, %c68_164] : memref<2x384xf32, #tpu.memory_space<vmem>>, vector<1x256xf32>
      %437 = vector.broadcast %50 : f32 to vector<1x256xf32>
      %438 = arith.mulf %437, %435 : vector<1x256xf32>
      %439 = vector.broadcast %99 : f32 to vector<1x256xf32>
      %440 = arith.mulf %439, %436 : vector<1x256xf32>
      %441 = arith.addf %438, %440 : vector<1x256xf32>
      %442 = arith.addf %434, %441 : vector<1x256xf32>
      %c0_165 = arith.constant 0 : index
      %c84_166 = arith.constant 84 : index
      %443 = vector.load %arg7[%c0_165, %c84_166] : memref<2x384xf32, #tpu.memory_space<vmem>>, vector<1x256xf32>
      %c1_167 = arith.constant 1 : index
      %c84_168 = arith.constant 84 : index
      %444 = vector.load %arg7[%c1_167, %c84_168] : memref<2x384xf32, #tpu.memory_space<vmem>>, vector<1x256xf32>
      %445 = vector.broadcast %57 : f32 to vector<1x256xf32>
      %446 = arith.mulf %445, %443 : vector<1x256xf32>
      %447 = vector.broadcast %106 : f32 to vector<1x256xf32>
      %448 = arith.mulf %447, %444 : vector<1x256xf32>
      %449 = arith.addf %446, %448 : vector<1x256xf32>
      %450 = arith.addf %442, %449 : vector<1x256xf32>
      %c0_169 = arith.constant 0 : index
      %c100 = arith.constant 100 : index
      %451 = vector.load %arg7[%c0_169, %c100] : memref<2x384xf32, #tpu.memory_space<vmem>>, vector<1x256xf32>
      %c1_170 = arith.constant 1 : index
      %c100_171 = arith.constant 100 : index
      %452 = vector.load %arg7[%c1_170, %c100_171] : memref<2x384xf32, #tpu.memory_space<vmem>>, vector<1x256xf32>
      %453 = vector.broadcast %64 : f32 to vector<1x256xf32>
      %454 = arith.mulf %453, %451 : vector<1x256xf32>
      %455 = vector.broadcast %113 : f32 to vector<1x256xf32>
      %456 = arith.mulf %455, %452 : vector<1x256xf32>
      %457 = arith.addf %454, %456 : vector<1x256xf32>
      %458 = arith.addf %450, %457 : vector<1x256xf32>
      %cst_172 = arith.constant 0.000000e+00 : f32
      %459 = vector.broadcast %cst_172 : f32 to vector<1x256xf32>
      %460 = arith.select %154, %458, %459 : vector<1x256xi1>, vector<1x256xf32>
      %461 = arith.addf %347, %460 : vector<1x256xf32>
      %c0_173 = arith.constant 0 : index
      %c5_174 = arith.constant 5 : index
      %462 = vector.load %arg7[%c0_173, %c5_174] : memref<2x384xf32, #tpu.memory_space<vmem>>, vector<1x256xf32>
      %c1_175 = arith.constant 1 : index
      %c5_176 = arith.constant 5 : index
      %463 = vector.load %arg7[%c1_175, %c5_176] : memref<2x384xf32, #tpu.memory_space<vmem>>, vector<1x256xf32>
      %464 = vector.broadcast %23 : f32 to vector<1x256xf32>
      %465 = arith.mulf %464, %462 : vector<1x256xf32>
      %466 = vector.broadcast %72 : f32 to vector<1x256xf32>
      %467 = arith.mulf %466, %463 : vector<1x256xf32>
      %468 = arith.addf %465, %467 : vector<1x256xf32>
      %c0_177 = arith.constant 0 : index
      %c21_178 = arith.constant 21 : index
      %469 = vector.load %arg7[%c0_177, %c21_178] : memref<2x384xf32, #tpu.memory_space<vmem>>, vector<1x256xf32>
      %c1_179 = arith.constant 1 : index
      %c21_180 = arith.constant 21 : index
      %470 = vector.load %arg7[%c1_179, %c21_180] : memref<2x384xf32, #tpu.memory_space<vmem>>, vector<1x256xf32>
      %471 = vector.broadcast %30 : f32 to vector<1x256xf32>
      %472 = arith.mulf %471, %469 : vector<1x256xf32>
      %473 = vector.broadcast %79 : f32 to vector<1x256xf32>
      %474 = arith.mulf %473, %470 : vector<1x256xf32>
      %475 = arith.addf %472, %474 : vector<1x256xf32>
      %476 = arith.addf %468, %475 : vector<1x256xf32>
      %c0_181 = arith.constant 0 : index
      %c37_182 = arith.constant 37 : index
      %477 = vector.load %arg7[%c0_181, %c37_182] : memref<2x384xf32, #tpu.memory_space<vmem>>, vector<1x256xf32>
      %c1_183 = arith.constant 1 : index
      %c37_184 = arith.constant 37 : index
      %478 = vector.load %arg7[%c1_183, %c37_184] : memref<2x384xf32, #tpu.memory_space<vmem>>, vector<1x256xf32>
      %479 = vector.broadcast %37 : f32 to vector<1x256xf32>
      %480 = arith.mulf %479, %477 : vector<1x256xf32>
      %481 = vector.broadcast %86 : f32 to vector<1x256xf32>
      %482 = arith.mulf %481, %478 : vector<1x256xf32>
      %483 = arith.addf %480, %482 : vector<1x256xf32>
      %484 = arith.addf %476, %483 : vector<1x256xf32>
      %c0_185 = arith.constant 0 : index
      %c53_186 = arith.constant 53 : index
      %485 = vector.load %arg7[%c0_185, %c53_186] : memref<2x384xf32, #tpu.memory_space<vmem>>, vector<1x256xf32>
      %c1_187 = arith.constant 1 : index
      %c53_188 = arith.constant 53 : index
      %486 = vector.load %arg7[%c1_187, %c53_188] : memref<2x384xf32, #tpu.memory_space<vmem>>, vector<1x256xf32>
      %487 = vector.broadcast %44 : f32 to vector<1x256xf32>
      %488 = arith.mulf %487, %485 : vector<1x256xf32>
      %489 = vector.broadcast %93 : f32 to vector<1x256xf32>
      %490 = arith.mulf %489, %486 : vector<1x256xf32>
      %491 = arith.addf %488, %490 : vector<1x256xf32>
      %492 = arith.addf %484, %491 : vector<1x256xf32>
      %c0_189 = arith.constant 0 : index
      %c69_190 = arith.constant 69 : index
      %493 = vector.load %arg7[%c0_189, %c69_190] : memref<2x384xf32, #tpu.memory_space<vmem>>, vector<1x256xf32>
      %c1_191 = arith.constant 1 : index
      %c69_192 = arith.constant 69 : index
      %494 = vector.load %arg7[%c1_191, %c69_192] : memref<2x384xf32, #tpu.memory_space<vmem>>, vector<1x256xf32>
      %495 = vector.broadcast %51 : f32 to vector<1x256xf32>
      %496 = arith.mulf %495, %493 : vector<1x256xf32>
      %497 = vector.broadcast %100 : f32 to vector<1x256xf32>
      %498 = arith.mulf %497, %494 : vector<1x256xf32>
      %499 = arith.addf %496, %498 : vector<1x256xf32>
      %500 = arith.addf %492, %499 : vector<1x256xf32>
      %c0_193 = arith.constant 0 : index
      %c85_194 = arith.constant 85 : index
      %501 = vector.load %arg7[%c0_193, %c85_194] : memref<2x384xf32, #tpu.memory_space<vmem>>, vector<1x256xf32>
      %c1_195 = arith.constant 1 : index
      %c85_196 = arith.constant 85 : index
      %502 = vector.load %arg7[%c1_195, %c85_196] : memref<2x384xf32, #tpu.memory_space<vmem>>, vector<1x256xf32>
      %503 = vector.broadcast %58 : f32 to vector<1x256xf32>
      %504 = arith.mulf %503, %501 : vector<1x256xf32>
      %505 = vector.broadcast %107 : f32 to vector<1x256xf32>
      %506 = arith.mulf %505, %502 : vector<1x256xf32>
      %507 = arith.addf %504, %506 : vector<1x256xf32>
      %508 = arith.addf %500, %507 : vector<1x256xf32>
      %c0_197 = arith.constant 0 : index
      %c101 = arith.constant 101 : index
      %509 = vector.load %arg7[%c0_197, %c101] : memref<2x384xf32, #tpu.memory_space<vmem>>, vector<1x256xf32>
      %c1_198 = arith.constant 1 : index
      %c101_199 = arith.constant 101 : index
      %510 = vector.load %arg7[%c1_198, %c101_199] : memref<2x384xf32, #tpu.memory_space<vmem>>, vector<1x256xf32>
      %511 = vector.broadcast %65 : f32 to vector<1x256xf32>
      %512 = arith.mulf %511, %509 : vector<1x256xf32>
      %513 = vector.broadcast %114 : f32 to vector<1x256xf32>
      %514 = arith.mulf %513, %510 : vector<1x256xf32>
      %515 = arith.addf %512, %514 : vector<1x256xf32>
      %516 = arith.addf %508, %515 : vector<1x256xf32>
      %cst_200 = arith.constant 0.000000e+00 : f32
      %517 = vector.broadcast %cst_200 : f32 to vector<1x256xf32>
      %518 = arith.select %163, %516, %517 : vector<1x256xi1>, vector<1x256xf32>
      %519 = arith.addf %403, %518 : vector<1x256xf32>
      %c0_201 = arith.constant 0 : index
      %c6_202 = arith.constant 6 : index
      %520 = vector.load %arg7[%c0_201, %c6_202] : memref<2x384xf32, #tpu.memory_space<vmem>>, vector<1x256xf32>
      %c1_203 = arith.constant 1 : index
      %c6_204 = arith.constant 6 : index
      %521 = vector.load %arg7[%c1_203, %c6_204] : memref<2x384xf32, #tpu.memory_space<vmem>>, vector<1x256xf32>
      %522 = vector.broadcast %24 : f32 to vector<1x256xf32>
      %523 = arith.mulf %522, %520 : vector<1x256xf32>
      %524 = vector.broadcast %73 : f32 to vector<1x256xf32>
      %525 = arith.mulf %524, %521 : vector<1x256xf32>
      %526 = arith.addf %523, %525 : vector<1x256xf32>
      %c0_205 = arith.constant 0 : index
      %c22_206 = arith.constant 22 : index
      %527 = vector.load %arg7[%c0_205, %c22_206] : memref<2x384xf32, #tpu.memory_space<vmem>>, vector<1x256xf32>
      %c1_207 = arith.constant 1 : index
      %c22_208 = arith.constant 22 : index
      %528 = vector.load %arg7[%c1_207, %c22_208] : memref<2x384xf32, #tpu.memory_space<vmem>>, vector<1x256xf32>
      %529 = vector.broadcast %31 : f32 to vector<1x256xf32>
      %530 = arith.mulf %529, %527 : vector<1x256xf32>
      %531 = vector.broadcast %80 : f32 to vector<1x256xf32>
      %532 = arith.mulf %531, %528 : vector<1x256xf32>
      %533 = arith.addf %530, %532 : vector<1x256xf32>
      %534 = arith.addf %526, %533 : vector<1x256xf32>
      %c0_209 = arith.constant 0 : index
      %c38_210 = arith.constant 38 : index
      %535 = vector.load %arg7[%c0_209, %c38_210] : memref<2x384xf32, #tpu.memory_space<vmem>>, vector<1x256xf32>
      %c1_211 = arith.constant 1 : index
      %c38_212 = arith.constant 38 : index
      %536 = vector.load %arg7[%c1_211, %c38_212] : memref<2x384xf32, #tpu.memory_space<vmem>>, vector<1x256xf32>
      %537 = vector.broadcast %38 : f32 to vector<1x256xf32>
      %538 = arith.mulf %537, %535 : vector<1x256xf32>
      %539 = vector.broadcast %87 : f32 to vector<1x256xf32>
      %540 = arith.mulf %539, %536 : vector<1x256xf32>
      %541 = arith.addf %538, %540 : vector<1x256xf32>
      %542 = arith.addf %534, %541 : vector<1x256xf32>
      %c0_213 = arith.constant 0 : index
      %c54_214 = arith.constant 54 : index
      %543 = vector.load %arg7[%c0_213, %c54_214] : memref<2x384xf32, #tpu.memory_space<vmem>>, vector<1x256xf32>
      %c1_215 = arith.constant 1 : index
      %c54_216 = arith.constant 54 : index
      %544 = vector.load %arg7[%c1_215, %c54_216] : memref<2x384xf32, #tpu.memory_space<vmem>>, vector<1x256xf32>
      %545 = vector.broadcast %45 : f32 to vector<1x256xf32>
      %546 = arith.mulf %545, %543 : vector<1x256xf32>
      %547 = vector.broadcast %94 : f32 to vector<1x256xf32>
      %548 = arith.mulf %547, %544 : vector<1x256xf32>
      %549 = arith.addf %546, %548 : vector<1x256xf32>
      %550 = arith.addf %542, %549 : vector<1x256xf32>
      %c0_217 = arith.constant 0 : index
      %c70_218 = arith.constant 70 : index
      %551 = vector.load %arg7[%c0_217, %c70_218] : memref<2x384xf32, #tpu.memory_space<vmem>>, vector<1x256xf32>
      %c1_219 = arith.constant 1 : index
      %c70_220 = arith.constant 70 : index
      %552 = vector.load %arg7[%c1_219, %c70_220] : memref<2x384xf32, #tpu.memory_space<vmem>>, vector<1x256xf32>
      %553 = vector.broadcast %52 : f32 to vector<1x256xf32>
      %554 = arith.mulf %553, %551 : vector<1x256xf32>
      %555 = vector.broadcast %101 : f32 to vector<1x256xf32>
      %556 = arith.mulf %555, %552 : vector<1x256xf32>
      %557 = arith.addf %554, %556 : vector<1x256xf32>
      %558 = arith.addf %550, %557 : vector<1x256xf32>
      %c0_221 = arith.constant 0 : index
      %c86_222 = arith.constant 86 : index
      %559 = vector.load %arg7[%c0_221, %c86_222] : memref<2x384xf32, #tpu.memory_space<vmem>>, vector<1x256xf32>
      %c1_223 = arith.constant 1 : index
      %c86_224 = arith.constant 86 : index
      %560 = vector.load %arg7[%c1_223, %c86_224] : memref<2x384xf32, #tpu.memory_space<vmem>>, vector<1x256xf32>
      %561 = vector.broadcast %59 : f32 to vector<1x256xf32>
      %562 = arith.mulf %561, %559 : vector<1x256xf32>
      %563 = vector.broadcast %108 : f32 to vector<1x256xf32>
      %564 = arith.mulf %563, %560 : vector<1x256xf32>
      %565 = arith.addf %562, %564 : vector<1x256xf32>
      %566 = arith.addf %558, %565 : vector<1x256xf32>
      %c0_225 = arith.constant 0 : index
      %c102 = arith.constant 102 : index
      %567 = vector.load %arg7[%c0_225, %c102] : memref<2x384xf32, #tpu.memory_space<vmem>>, vector<1x256xf32>
      %c1_226 = arith.constant 1 : index
      %c102_227 = arith.constant 102 : index
      %568 = vector.load %arg7[%c1_226, %c102_227] : memref<2x384xf32, #tpu.memory_space<vmem>>, vector<1x256xf32>
      %569 = vector.broadcast %66 : f32 to vector<1x256xf32>
      %570 = arith.mulf %569, %567 : vector<1x256xf32>
      %571 = vector.broadcast %115 : f32 to vector<1x256xf32>
      %572 = arith.mulf %571, %568 : vector<1x256xf32>
      %573 = arith.addf %570, %572 : vector<1x256xf32>
      %574 = arith.addf %566, %573 : vector<1x256xf32>
      %cst_228 = arith.constant 0.000000e+00 : f32
      %575 = vector.broadcast %cst_228 : f32 to vector<1x256xf32>
      %576 = arith.select %172, %574, %575 : vector<1x256xi1>, vector<1x256xf32>
      %577 = arith.addf %461, %576 : vector<1x256xf32>
      %578 = arith.addf %577, %519 : vector<1x256xf32>
      %579 = arith.negf %578 : vector<1x256xf32>
      %580 = math.exp %579 : vector<1x256xf32>
      %cst_229 = arith.constant 1.000000e+00 : f32
      %581 = vector.broadcast %cst_229 : f32 to vector<1x256xf32>
      %582 = arith.addf %581, %580 : vector<1x256xf32>
      %583 = arith.divf %581, %582 : vector<1x256xf32>
      %c0_230 = arith.constant 0 : index
      %c0_231 = arith.constant 0 : index
      %c0_232 = arith.constant 0 : index
      %584 = vector.load %arg6[%c0_230, %c0_231, %c0_232] : memref<1x1x256xf32, #tpu.memory_space<vmem>>, vector<1x1x256xf32>
      %585 = vector.shape_cast %584 : vector<1x1x256xf32> to vector<1x256xf32>
      %586 = vector.shape_cast %583 : vector<1x256xf32> to vector<1x1x256xf32>
      tpu.vector_store %arg6[%c0_230, %c0_231, %c0_232], %586 {strides = array<i32>} : memref<1x1x256xf32, #tpu.memory_space<vmem>>, vector<1x1x256xf32>,
    } else {
    }
    return
  }
  func.func @transform_0(%arg0: i32, %arg1: i32) -> i32 {
    %c0_i32 = arith.constant 0 : i32
    %c0_i32_0 = arith.constant 0 : i32
    return %c0_i32 : i32
  }
  func.func @transform_1(%arg0: i32, %arg1: i32) -> i32 {
    %c0_i32 = arith.constant 0 : i32
    %c0_i32_0 = arith.constant 0 : i32
    return %c0_i32 : i32
  }
  func.func @transform_2(%arg0: i32, %arg1: i32) -> (i32, i32) {
    %c0_i32 = arith.constant 0 : i32
    %c0_i32_0 = arith.constant 0 : i32
    %c0_i32_1 = arith.constant 0 : i32
    return %c0_i32, %c0_i32_0 : i32, i32
  }
  func.func @transform_3(%arg0: i32, %arg1: i32) -> (i32, i32, i32) {
    %c0_i32 = arith.constant 0 : i32
    %c0_i32_0 = arith.constant 0 : i32
    return %arg0, %arg1, %c0_i32 : i32, i32, i32
  }
  func.func @transform_4(%arg0: i32, %arg1: i32) -> (i32, i32, i32) {
    %c0_i32 = arith.constant 0 : i32
    %c0_i32_0 = arith.constant 0 : i32
    %c0_i32_1 = arith.constant 0 : i32
    return %arg0, %c0_i32, %c0_i32_0 : i32, i32, i32
  }
}

</mosaic_0001>

<llo_original>
// kernel: tpu_custom_call.1
$region0: #{tpu_custom_call.1}
  #allocation0 [shape = 'u32[]', space=smem, size = 0x4, offset = 0x4, fixed_abs, tag = 'smem constant byte address 0x4 - core index']
  #allocation1 [shape = 'u32[144,128]{1,0:T(1,128)}', space=vmem, size = 0x12000, scoped, tag = 'internal scratch']
  #allocation2 [shape = 'f32[2,384]{1,0:T(2,128)}', space=vmem, size = 0xc00, scoped, tag = 'scratch operand']
  #allocation3 [shape = 'f32[1]{0:T(128)S(6)}', space=smem, size = 0x200, scoped, tag = 'scoped memory for tpu_custom_call.1']
  %s0 = inlined_call_operand.vmem [shape: f32[98], index: 0, kind: input, shape index: {}]
  %s1 = inlined_call_operand.<no memory space> [shape: f32[1], index: 1, kind: input, shape index: {}]
  %s2 = inlined_call_operand.vmem [shape: s32[1,256], index: 2, kind: input, shape index: {}]
  %s3 = inlined_call_operand.hbm [shape: f32[2,4,256], index: 3, kind: input, shape index: {}]
  %s4 = inlined_call_operand.hbm [shape: f32[2,1,256], index: 4, kind: output, shape index: {}]
  %s5 = sld [smem:[#allocation0]]
  $region73: #{tpu_custom_call.1} parent=0
    _
  %s7 = ssub.s32 1, %s5
  %s8 = scalar_select 0, %s7, %s5
  %9 = sst [smem:[#allocation3]] %s1
  $region1: #{tpu_custom_call.1} parent=0
    #allocation4 [shape = 'u8[512]{0}', space=smem, size = 0x200, scoped, tag = 'input window, operand 0, single buffered']
    #allocation5 [shape = 's32[2]{0}', space=sflag, size = 0x8, scoped, tag = 'scoped memory for tpu_custom_call.1']
    #allocation6 [shape = 's32[2]{0}', space=sflag, size = 0x8, scoped, tag = 'scoped memory for tpu_custom_call.1']
    #allocation7 [shape = 's32[2]{0}', space=sflag, size = 0x8, scoped, tag = 'scoped memory for tpu_custom_call.1']
    #allocation8 [shape = 'u8[8192]{0}', space=vmem, size = 0x2000, scoped, tag = 'input window, operand 3']
    #allocation9 [shape = 'u8[2048]{0}', space=vmem, size = 0x800, scoped, tag = 'output window, operand 0']
    %10 = vsyncpa [#allocation7], 0
    %11 = vsyncpa [#allocation5], 0
    %s12 = scalar_lea.sflag [#allocation5], 1
    %13 = vsyncpa %s12, 0
    %14 = vsyncpa [#allocation6], 0
    %s15 = scalar_lea.sflag [#allocation6], 1
    %16 = vsyncpa %s15, 0
    loop: start=0, step=1, limit=4
    $region2: #{tpu_custom_call.1} parent=1 // loop_pre_header
      _
    $region3: #{tpu_custom_call.1} parent=1 // loop_header
      %s18 = sphi 0, %s22
      %p19 = scmp.ge.s32.totalorder %s18, 4
      %s25 = sphi 0, %s37
      %s26 = sphi 0, %s33
      %s27 = sphi 0, %s25
      %s28 = sphi 0, %s26
      %s29 = sphi 0, %s27
      %s30 = sphi 0, %s28
      %s38 = sphi 0, %s38
      %s40 = sphi 0, %s38
      %s41 = sphi 0, %s40
      %s55 = sphi 0, %s41
      %s59 = sphi 0, %s59
      %s61 = sphi 0, %s59
      %s62 = sphi 0, %s61
      %s76 = sphi 0, %s62
      %s80 = sphi 0, %s80
      %s82 = sphi 0, %s80
      %s83 = sphi 0, %s82
      %s97 = sphi 0, %s83
      %s105 = sphi 0, %s107
      %s108 = sphi 0, %s105
      %s109 = sphi 0, %s108
      %s125 = sphi 0, %s109
      %s131 = sphi 0, %s133
      %s134 = sphi 0, %s131
      %s135 = sphi 0, %s134
      %s151 = sphi 0, %s135
    $region4: #{tpu_custom_call.1} parent=1 // loop_header_branch
      %21 = sbr.rel (%p19) target = $region8
    $region5: #{tpu_custom_call.1} parent=1 // loop_body
      %s23 = ssub.s32 %s18, 1
      %s24 = ssub.s32 %s18, 2
      %s31 = sadd.s32 1, %s26
      %p32 = scmp.ge.s32.totalorder %s31, 1
      %s33 = scalar_select %p32, 0, %s31
      %s34 = sadd.s32 1, %s25
      %s35 = scalar_select %p32, %s34, %s25
      %p36 = scmp.ge.s32.totalorder %s35, 2
      %s37 = scalar_select %p36, 0, %s35
      %s39 = sadd.s32 %s38, 1
      %p42 = scmp.eq.s32.totalorder %s18, 1
      %p43 = scmp.ne.s32.totalorder %s38, %s40
      %p44 = scmp.eq.s32.totalorder %s18, 0
      %p45 = por %p43, %p44
      %p46 = scmp.ne.s32.totalorder %s38, %s40
      %p47 = scmp.eq.s32.totalorder %s23, 1
      %p48 = por %p46, %p47
      %p49 = scmp.ne.s32.totalorder %s40, %s41
      %p50 = scmp.eq.s32.totalorder %s23, 0
      %p51 = por %p49, %p50
      %p52 = scmp.ne.s32.totalorder %s40, %s41
      %p53 = scmp.eq.s32.totalorder %s24, 1
      %p54 = por %p52, %p53
      %p56 = scmp.ne.s32.totalorder %s41, %s55
      %p57 = scmp.eq.s32.totalorder %s24, 0
      %p58 = por %p56, %p57
      %s60 = sadd.s32 %s59, 1
      %p63 = scmp.eq.s32.totalorder %s18, 1
      %p64 = scmp.ne.s32.totalorder %s59, %s61
      %p65 = scmp.eq.s32.totalorder %s18, 0
      %p66 = por %p64, %p65
      %p67 = scmp.ne.s32.totalorder %s59, %s61
      %p68 = scmp.eq.s32.totalorder %s23, 1
      %p69 = por %p67, %p68
      %p70 = scmp.ne.s32.totalorder %s61, %s62
      %p71 = scmp.eq.s32.totalorder %s23, 0
      %p72 = por %p70, %p71
      %p73 = scmp.ne.s32.totalorder %s61, %s62
      %p74 = scmp.eq.s32.totalorder %s24, 1
      %p75 = por %p73, %p74
      %p77 = scmp.ne.s32.totalorder %s62, %s76
      %p78 = scmp.eq.s32.totalorder %s24, 0
      %p79 = por %p77, %p78
      %s81 = sadd.s32 %s80, 1
      %p84 = scmp.eq.s32.totalorder %s18, 1
      %p85 = scmp.ne.s32.totalorder %s80, %s82
      %p86 = scmp.eq.s32.totalorder %s18, 0
      %p87 = por %p85, %p86
      %p88 = scmp.ne.s32.totalorder %s80, %s82
      %p89 = scmp.eq.s32.totalorder %s23, 1
      %p90 = por %p88, %p89
      %p91 = scmp.ne.s32.totalorder %s82, %s83
      %p92 = scmp.eq.s32.totalorder %s23, 0
      %p93 = por %p91, %p92
      %p94 = scmp.ne.s32.totalorder %s82, %s83
      %p95 = scmp.eq.s32.totalorder %s24, 1
      %p96 = por %p94, %p95
      %p98 = scmp.ne.s32.totalorder %s83, %s97
      %p99 = scmp.eq.s32.totalorder %s24, 0
      %p100 = por %p98, %p99
      %s101 = ssub.s32 %s25, %s37
      %s102 = ssub.s32 %s26, %s33
      %s103 = sor.u32 %s101, %s102
      %p104 = scmp.eq.s32.totalorder %s103, 0
      %s106 = sadd.s32 %s105, 1
      %s107 = scalar_select %p104, %s105, %s106
      %p110 = pneg %p104
      %p111 = scmp.eq.s32.totalorder %s18, 1
      %p112 = por %p110, %p111
      %p113 = scmp.ne.s32.totalorder %s105, %s108
      %p114 = scmp.eq.s32.totalorder %s18, 0
      %p115 = por %p113, %p114
      %p116 = scmp.ne.s32.totalorder %s105, %s108
      %p117 = scmp.eq.s32.totalorder %s23, 1
      %p118 = por %p116, %p117
      %p119 = scmp.ne.s32.totalorder %s108, %s109
      %p120 = scmp.eq.s32.totalorder %s23, 0
      %p121 = por %p119, %p120
      %p122 = scmp.ne.s32.totalorder %s108, %s109
      %p123 = scmp.eq.s32.totalorder %s24, 1
      %p124 = por %p122, %p123
      %p126 = scmp.ne.s32.totalorder %s109, %s125
      %p127 = scmp.eq.s32.totalorder %s24, 0
      %p128 = por %p126, %p127
      %s129 = ssub.s32 %s25, %s37
      %p130 = scmp.eq.s32.totalorder %s129, 0
      %s132 = sadd.s32 %s131, 1
      %s133 = scalar_select %p130, %s131, %s132
      %p136 = pneg %p130
      %p137 = scmp.eq.s32.totalorder %s18, 1
      %p138 = por %p136, %p137
      %p139 = scmp.ne.s32.totalorder %s131, %s134
      %p140 = scmp.eq.s32.totalorder %s18, 0
      %p141 = por %p139, %p140
      %p142 = scmp.ne.s32.totalorder %s131, %s134
      %p143 = scmp.eq.s32.totalorder %s23, 1
      %p144 = por %p142, %p143
      %p145 = scmp.ne.s32.totalorder %s134, %s135
      %p146 = scmp.eq.s32.totalorder %s23, 0
      %p147 = por %p145, %p146
      %p148 = scmp.ne.s32.totalorder %s134, %s135
      %p149 = scmp.eq.s32.totalorder %s24, 1
      %p150 = por %p148, %p149
      %p152 = scmp.ne.s32.totalorder %s135, %s151
      %p153 = scmp.eq.s32.totalorder %s24, 0
      %p154 = por %p152, %p153
      %p155 = scmp.le.s32.totalorder 1, %s18
      %p156 = scmp.lt.s32.totalorder %s18, 3
      %p157 = pnand %p155, %p156
      %p158 = pneg %p157
      // Predicated region
      $region9: #{tpu_custom_call.1} parent=5 // pred_check
        _
      $region10: #{tpu_custom_call.1} parent=5 // pred_check_branch
        %160 = sbr.rel (%p157) target = $region12
      $region11: #{tpu_custom_call.1} parent=5 // pred_region
        %s161 = ssub.s32 %s18, 1
        // Predicated region
        $region13: #{tpu_custom_call.1} parent=11 // pred_check
          %p162 = pneg %p51
        $region14: #{tpu_custom_call.1} parent=11 // pred_check_branch
          %164 = sbr.rel (%p162) target = $region16
        $region15: #{tpu_custom_call.1} parent=11 // pred_region
          %s166 = ssub.s32 16, 16
          %167 = vsyncadd [#allocation7], %s166
          %s169 = sshll.u32 %s0, 4
          %s170 = int_to_ptr.vmem [resolvable:$true] %s169
          %172 = dma.vmem_to_smem %s170, 16, [#allocation4], [#allocation7]
        $region16: #{tpu_custom_call.1} parent=11 // pred_fallthru
          _
        // Predicated region
        $region17: #{tpu_custom_call.1} parent=11 // pred_check
          %p173 = pneg %p72
        $region18: #{tpu_custom_call.1} parent=11 // pred_check_branch
          %175 = sbr.rel (%p173) target = $region20
        $region19: #{tpu_custom_call.1} parent=11 // pred_region
          _
        $region20: #{tpu_custom_call.1} parent=11 // pred_fallthru
          _
        // Predicated region
        $region21: #{tpu_custom_call.1} parent=11 // pred_check
          %p176 = pneg %p93
        $region22: #{tpu_custom_call.1} parent=11 // pred_check_branch
          %178 = sbr.rel (%p176) target = $region24
        $region23: #{tpu_custom_call.1} parent=11 // pred_region
          _
        $region24: #{tpu_custom_call.1} parent=11 // pred_fallthru
          _
      $region12: #{tpu_custom_call.1} parent=5 // pred_fallthru
        _
      %p179 = scmp.lt.s32.totalorder %s18, 2
      // Predicated region
      $region25: #{tpu_custom_call.1} parent=5 // pred_check
        %p180 = pneg %p179
      $region26: #{tpu_custom_call.1} parent=5 // pred_check_branch
        %182 = sbr.rel (%p180) target = $region28
      $region27: #{tpu_custom_call.1} parent=5 // pred_region
        // Predicated region
        $region29: #{tpu_custom_call.1} parent=27 // pred_check
          %p183 = pneg %p115
        $region30: #{tpu_custom_call.1} parent=27 // pred_check_branch
          %185 = sbr.rel (%p183) target = $region32
        $region31: #{tpu_custom_call.1} parent=27 // pred_region
          %s186 = sand.u32 %s105, 1
          %s187 = scalar_lea.sflag [#allocation5], %s186
          %s188 = sand.u32 %s105, 1
          %s189 = smul.addr %s188, 8
          %s190 = scalar_lea.vmem [#allocation8], %s189
          %s192 = ssub.s32 128, 128
          %193 = vsyncadd %s187, %s192
          %s194 = smul.addr %s26, 2
          %s195 = smul.addr %s25, 2
          %s196 = sadd.s32 %s194, %s195
          %s197 = smul.addr %s196, 64
          %s198 = scalar_lea.hbm %s3, %s197
          %s200 = sshll.u32 %s190, 4
          %s201 = int_to_ptr.vmem [resolvable:$true] %s200
          %203 = dma.hbm_to_vmem [thread:$0]  %s198, 128, %s201, %s187
        $region32: #{tpu_custom_call.1} parent=27 // pred_fallthru
          _
      $region28: #{tpu_custom_call.1} parent=5 // pred_fallthru
        _
      %p204 = scmp.le.s32.totalorder 1, %s18
      %p205 = scmp.lt.s32.totalorder %s18, 3
      %p206 = pnand %p204, %p205
      %p207 = pneg %p206
      // Predicated region
      $region33: #{tpu_custom_call.1} parent=5 // pred_check
        _
      $region34: #{tpu_custom_call.1} parent=5 // pred_check_branch
        %209 = sbr.rel (%p206) target = $region36
      $region35: #{tpu_custom_call.1} parent=5 // pred_region
        %s210 = ssub.s32 %s18, 1
        // Predicated region
        $region37: #{tpu_custom_call.1} parent=35 // pred_check
          %p211 = pneg %p51
        $region38: #{tpu_custom_call.1} parent=35 // pred_check_branch
          %213 = sbr.rel (%p211) target = $region40
        $region39: #{tpu_custom_call.1} parent=35 // pred_region
          %214 = dma.done [#allocation7], 16
        $region40: #{tpu_custom_call.1} parent=35 // pred_fallthru
          _
        %s215 = sand.u32 %s108, 1
        %s216 = scalar_lea.sflag [#allocation5], %s215
        %s217 = sand.u32 %s108, 1
        %s218 = smul.addr %s217, 8
        %s219 = scalar_lea.vmem [#allocation8], %s218
        // Predicated region
        $region41: #{tpu_custom_call.1} parent=35 // pred_check
          %p220 = pneg %p121
        $region42: #{tpu_custom_call.1} parent=35 // pred_check_branch
          %222 = sbr.rel (%p220) target = $region44
        $region43: #{tpu_custom_call.1} parent=35 // pred_region
          %223 = dma.done %s216, 128
        $region44: #{tpu_custom_call.1} parent=35 // pred_fallthru
          _
        %224 = sfence
        %p225 = pneg %p51
        %p226 = pneg %p48
        %p227 = pneg %p72
        %p228 = pneg %p69
        %p229 = pneg %p93
        %p230 = pneg %p90
        %s231 = sand.u32 %s108, 1
        %s232 = scalar_lea.sflag [#allocation5], %s231
        %s233 = sand.u32 %s108, 1
        %s234 = smul.addr %s233, 8
        %s235 = scalar_lea.vmem [#allocation8], %s234
        %p236 = pneg %p121
        %p237 = pneg %p118
        %p238 = pneg %p147
        %p239 = pneg %p144
        %s240 = sand.u32 %s134, 1
        %s241 = scalar_lea.sflag [#allocation6], %s240
        %s242 = sand.u32 %s134, 1
        %s243 = smul.addr %s242, 2
        %s244 = scalar_lea.vmem [#allocation9], %s243
        %p245 = scmp.eq.s32.totalorder %s28, 0
        // Predicated region
        $region45: #{tpu_custom_call.1} parent=35 // pred_check
          %p246 = pneg %p245
        $region46: #{tpu_custom_call.1} parent=35 // pred_check_branch
          %248 = sbr.rel (%p246) target = $region48
        $region47: #{tpu_custom_call.1} parent=35 // pred_region
          %vm249 = vcmask 410624
          %250 = vst.msk [vmem:[#allocation2] sm:$0x3] %vm249, 0.0
          %vm251 = vcmask 1041816
          %252 = vst.msk [vmem:[#allocation2 + $0x4] sm:$0x3] %vm251, 0.0
        $region48: #{tpu_custom_call.1} parent=35 // pred_fallthru
          _
        %v253 = vld [vmem:[%s219] sm:$0xff]
        %v255 = vcombine.high %v253, %v253
        %vm257 = vcmask 1043456
        %v258 = vsel %vm257, %v253, 0.0
        %v259 = vrot.slane %v258, 4
        %v260 = vadd.f32 %v258, %v259
        %v261 = vrot.slane %v260, 2
        %v262 = vadd.f32 %v260, %v261
        %v263 = vrot.slane %v262, 1
        %v264 = vadd.f32 %v262, %v263
        %v265 = vsel %vm257, %v255, 0.0
        %v266 = vrot.slane %v265, 4
        %v267 = vadd.f32 %v265, %v266
        %v268 = vrot.slane %v267, 2
        %v269 = vadd.f32 %v267, %v268
        %v270 = vrot.slane %v269, 1
        %v271 = vadd.f32 %v269, %v270
        %v272 = vsel %vm257, %v253, -inf
        %v273 = vrot.slane %v272, 4
        %v274 = vmax.f32 %v272, %v273
        %v275 = vrot.slane %v274, 2
        %v276 = vmax.f32 %v274, %v275
        %v277 = vrot.slane %v276, 1
        %v278 = vmax.f32 %v276, %v277
        %v279 = vsel %vm257, %v255, -inf
        %v280 = vrot.slane %v279, 4
        %v281 = vmax.f32 %v279, %v280
        %v282 = vrot.slane %v281, 2
        %v283 = vmax.f32 %v281, %v282
        %v284 = vrot.slane %v283, 1
        %v285 = vmax.f32 %v283, %v284
        // Predicated region
        $region49: #{tpu_custom_call.1} parent=35 // pred_check
          %p286 = pneg %p245
        $region50: #{tpu_custom_call.1} parent=35 // pred_check_branch
          %288 = sbr.rel (%p286) target = $region52
        $region51: #{tpu_custom_call.1} parent=35 // pred_region
          %v291 = vcombine.low %v264, %v271
          %v293 = vunpack.c.l.s4 1966171168
          %v294 = vunpack.c.0.s8 %v293
          %v295 = vlaneseq
          %v296 = vshrl.u32 %v295, 7
          %v297 = vsub.s32 %v294, %v296
          %v298 = vrot.slane %v291, %v297
          %v300 = vunpack.c.l.s4 1966171168
          %v301 = vunpack.c.0.s8 %v300
          %v302 = vlaneseq
          %v303 = vshrl.u32 %v302, 7
          %v304 = vsub.s32 %v301, %v303
          %v305 = vrot.slane %v298, %v304
          %306 = vrot.lane.b32.xlu0 %v305, 51
          %v307 = vpop.permute.xlu0 %306
          %v308 = vrot.slane %v307, 7
          %vm309 = vcmask 416768
          %v310 = vsel %vm309, %v308, %v307
          %v312 = vlaneseq
          %vm313 = vcmp.ge.s32.totalorder %v312, 51
          %vm314 = vcmp.lt.s32.totalorder %v312, 307
          %vm315 = vmand %vm313, %vm314
          %316 = vst.msk [vmem:[#allocation2] ss:$2 sm:$0x7] %vm315, %v310
          %v319 = vcombine.low %v278, %v285
          %v321 = vunpack.c.l.s4 1966171168
          %v322 = vunpack.c.0.s8 %v321
          %v323 = vlaneseq
          %v324 = vshrl.u32 %v323, 7
          %v325 = vsub.s32 %v322, %v324
          %v326 = vrot.slane %v319, %v325
          %v328 = vunpack.c.l.s4 1966171168
          %v329 = vunpack.c.0.s8 %v328
          %v330 = vlaneseq
          %v331 = vshrl.u32 %v330, 7
          %v332 = vsub.s32 %v329, %v331
          %v333 = vrot.slane %v326, %v332
          %334 = vrot.lane.b32.xlu0 %v333, 51
          %v335 = vpop.permute.xlu0 %334
          %v336 = vrot.slane %v335, 7
          %v337 = vsel %vm309, %v336, %v335
          %s339 = scalar_lea.vmem [#allocation2], 1
          %340 = vst.msk [vmem:[%s339] ss:$2 sm:$0x7] %vm315, %v337
        $region52: #{tpu_custom_call.1} parent=35 // pred_fallthru
          _
        %p341 = scmp.gt.s32.totalorder %s28, 0
        // Predicated region
        $region53: #{tpu_custom_call.1} parent=35 // pred_check
          %p342 = pneg %p341
        $region54: #{tpu_custom_call.1} parent=35 // pred_check_branch
          %344 = sbr.rel (%p342) target = $region56
        $region55: #{tpu_custom_call.1} parent=35 // pred_region
          %v345 = vld [vmem:[#allocation2] ss:$2 sm:$0x7]
          %s346 = scalar_lea.vmem [#allocation2], 1
          %v347 = vld [vmem:[%s346] ss:$2 sm:$0x7]
          %v350 = vcombine.low %v264, %v271
          %v352 = vunpack.c.l.s4 1966171168
          %v353 = vunpack.c.0.s8 %v352
          %v354 = vlaneseq
          %v355 = vshrl.u32 %v354, 7
          %v356 = vsub.s32 %v353, %v355
          %v357 = vrot.slane %v350, %v356
          %v359 = vunpack.c.l.s4 1966171168
          %v360 = vunpack.c.0.s8 %v359
          %v361 = vlaneseq
          %v362 = vshrl.u32 %v361, 7
          %v363 = vsub.s32 %v360, %v362
          %v364 = vrot.slane %v357, %v363
          %365 = vrot.lane.b32.xlu0 %v364, 51
          %v366 = vpop.permute.xlu0 %365
          %v367 = vrot.slane %v366, 7
          %vm368 = vcmask 416768
          %v369 = vsel %vm368, %v367, %v366
          %v371 = vadd.f32 %v345, %v369
          %v372 = vlaneseq
          %vm373 = vcmp.ge.s32.totalorder %v372, 51
          %vm374 = vcmp.lt.s32.totalorder %v372, 307
          %vm375 = vmand %vm373, %vm374
          %376 = vst.msk [vmem:[#allocation2] ss:$2 sm:$0x7] %vm375, %v371
          %v379 = vcombine.low %v278, %v285
          %v381 = vunpack.c.l.s4 1966171168
          %v382 = vunpack.c.0.s8 %v381
          %v383 = vlaneseq
          %v384 = vshrl.u32 %v383, 7
          %v385 = vsub.s32 %v382, %v384
          %v386 = vrot.slane %v379, %v385
          %v388 = vunpack.c.l.s4 1966171168
          %v389 = vunpack.c.0.s8 %v388
          %v390 = vlaneseq
          %v391 = vshrl.u32 %v390, 7
          %v392 = vsub.s32 %v389, %v391
          %v393 = vrot.slane %v386, %v392
          %394 = vrot.lane.b32.xlu0 %v393, 51
          %v395 = vpop.permute.xlu0 %394
          %v396 = vrot.slane %v395, 7
          %v397 = vsel %vm368, %v396, %v395
          %v399 = vmax.f32 %v347, %v397
          %400 = vst.msk [vmem:[%s346] ss:$2 sm:$0x7] %vm375, %v399
        $region56: #{tpu_custom_call.1} parent=35 // pred_fallthru
          _
        // Predicated region
        $region57: #{tpu_custom_call.1} parent=35 // pred_check
          %p401 = pneg %p245
        $region58: #{tpu_custom_call.1} parent=35 // pred_check_branch
          %403 = sbr.rel (%p401) target = $region60
        $region59: #{tpu_custom_call.1} parent=35 // pred_region
          %s404 = sld [smem:[#allocation4]]
          %s405 = sld [smem:[#allocation4 + $0x1]]
          %s406 = sld [smem:[#allocation4 + $0x2]]
          %s407 = sld [smem:[#allocation4 + $0x3]]
          %s408 = sld [smem:[#allocation4 + $0x4]]
          %s409 = sld [smem:[#allocation4 + $0x5]]
          %s410 = sld [smem:[#allocation4 + $0x6]]
          %s411 = sld [smem:[#allocation4 + $0x7]]
          %s412 = sld [smem:[#allocation4 + $0x8]]
          %s413 = sld [smem:[#allocation4 + $0x9]]
          %s414 = sld [smem:[#allocation4 + $0xa]]
          %s415 = sld [smem:[#allocation4 + $0xb]]
          %s416 = sld [smem:[#allocation4 + $0xc]]
          %s417 = sld [smem:[#allocation4 + $0xd]]
          %s418 = sld [smem:[#allocation4 + $0xe]]
          %s419 = sld [smem:[#allocation4 + $0xf]]
          %s420 = sld [smem:[#allocation4 + $0x10]]
          %s421 = sld [smem:[#allocation4 + $0x11]]
          %s422 = sld [smem:[#allocation4 + $0x12]]
          %s423 = sld [smem:[#allocation4 + $0x13]]
          %s424 = sld [smem:[#allocation4 + $0x14]]
          %s425 = sld [smem:[#allocation4 + $0x15]]
          %s426 = sld [smem:[#allocation4 + $0x16]]
          %s427 = sld [smem:[#allocation4 + $0x17]]
          %s428 = sld [smem:[#allocation4 + $0x18]]
          %s429 = sld [smem:[#allocation4 + $0x19]]
          %s430 = sld [smem:[#allocation4 + $0x1a]]
          %s431 = sld [smem:[#allocation4 + $0x1b]]
          %s432 = sld [smem:[#allocation4 + $0x1c]]
          %s433 = sld [smem:[#allocation4 + $0x1d]]
          %s434 = sld [smem:[#allocation4 + $0x1e]]
          %s435 = sld [smem:[#allocation4 + $0x1f]]
          %s436 = sld [smem:[#allocation4 + $0x20]]
          %s437 = sld [smem:[#allocation4 + $0x21]]
          %s438 = sld [smem:[#allocation4 + $0x22]]
          %s439 = sld [smem:[#allocation4 + $0x23]]
          %s440 = sld [smem:[#allocation4 + $0x24]]
          %s441 = sld [smem:[#allocation4 + $0x25]]
          %s442 = sld [smem:[#allocation4 + $0x26]]
          %s443 = sld [smem:[#allocation4 + $0x27]]
          %s444 = sld [smem:[#allocation4 + $0x28]]
          %s445 = sld [smem:[#allocation4 + $0x29]]
          %s446 = sld [smem:[#allocation4 + $0x2a]]
          %s447 = sld [smem:[#allocation4 + $0x2b]]
          %s448 = sld [smem:[#allocation4 + $0x2c]]
          %s449 = sld [smem:[#allocation4 + $0x2d]]
          %s450 = sld [smem:[#allocation4 + $0x2e]]
          %s451 = sld [smem:[#allocation4 + $0x2f]]
          %s452 = sld [smem:[#allocation4 + $0x30]]
          %s453 = sld [smem:[#allocation4 + $0x31]]
          %s454 = sld [smem:[#allocation4 + $0x32]]
          %s455 = sld [smem:[#allocation4 + $0x33]]
          %s456 = sld [smem:[#allocation4 + $0x34]]
          %s457 = sld [smem:[#allocation4 + $0x35]]
          %s458 = sld [smem:[#allocation4 + $0x36]]
          %s459 = sld [smem:[#allocation4 + $0x37]]
          %s460 = sld [smem:[#allocation4 + $0x38]]
          %s461 = sld [smem:[#allocation4 + $0x39]]
          %s462 = sld [smem:[#allocation4 + $0x3a]]
          %s463 = sld [smem:[#allocation4 + $0x3b]]
          %s464 = sld [smem:[#allocation4 + $0x3c]]
          %s465 = sld [smem:[#allocation4 + $0x3d]]
          %s466 = sld [smem:[#allocation4 + $0x3e]]
          %s467 = sld [smem:[#allocation4 + $0x3f]]
          %s468 = sld [smem:[#allocation4 + $0x40]]
          %s469 = sld [smem:[#allocation4 + $0x41]]
          %s470 = sld [smem:[#allocation4 + $0x42]]
          %s471 = sld [smem:[#allocation4 + $0x43]]
          %s472 = sld [smem:[#allocation4 + $0x44]]
          %s473 = sld [smem:[#allocation4 + $0x45]]
          %s474 = sld [smem:[#allocation4 + $0x46]]
          %s475 = sld [smem:[#allocation4 + $0x47]]
          %s476 = sld [smem:[#allocation4 + $0x48]]
          %s477 = sld [smem:[#allocation4 + $0x49]]
          %s478 = sld [smem:[#allocation4 + $0x4a]]
          %s479 = sld [smem:[#allocation4 + $0x4b]]
          %s480 = sld [smem:[#allocation4 + $0x4c]]
          %s481 = sld [smem:[#allocation4 + $0x4d]]
          %s482 = sld [smem:[#allocation4 + $0x4e]]
          %s483 = sld [smem:[#allocation4 + $0x4f]]
          %s484 = sld [smem:[#allocation4 + $0x50]]
          %s485 = sld [smem:[#allocation4 + $0x51]]
          %s486 = sld [smem:[#allocation4 + $0x52]]
          %s487 = sld [smem:[#allocation4 + $0x53]]
          %s488 = sld [smem:[#allocation4 + $0x54]]
          %s489 = sld [smem:[#allocation4 + $0x55]]
          %s490 = sld [smem:[#allocation4 + $0x56]]
          %s491 = sld [smem:[#allocation4 + $0x57]]
          %s492 = sld [smem:[#allocation4 + $0x58]]
          %s493 = sld [smem:[#allocation4 + $0x59]]
          %s494 = sld [smem:[#allocation4 + $0x5a]]
          %s495 = sld [smem:[#allocation4 + $0x5b]]
          %s496 = sld [smem:[#allocation4 + $0x5c]]
          %s497 = sld [smem:[#allocation4 + $0x5d]]
          %s498 = sld [smem:[#allocation4 + $0x5e]]
          %s499 = sld [smem:[#allocation4 + $0x5f]]
          %s500 = sld [smem:[#allocation4 + $0x60]]
          %s501 = sld [smem:[#allocation4 + $0x61]]
          %s502 = sld [smem:[#allocation3]]
          %v503 = vstv %s502
          %v504 = vld [vmem:[%s2] sm:$0x3]
          %v505 = vadd.s32 %v504, 4294967293
          %vm506 = vcmp.ge.s32.totalorder %v505, 0
          %vm507 = vcmp.lt.s32.totalorder %v505, 16
          %vm508 = vmand %vm506, %vm507
          %v509 = vadd.s32 %v504, 4294967294
          %vm510 = vcmp.ge.s32.totalorder %v509, 0
          %vm511 = vcmp.lt.s32.totalorder %v509, 16
          %vm512 = vmand %vm510, %vm511
          %v513 = vadd.s32 %v504, 4294967295
          %vm514 = vcmp.ge.s32.totalorder %v513, 0
          %vm515 = vcmp.lt.s32.totalorder %v513, 16
          %vm516 = vmand %vm514, %vm515
          %v517 = vadd.s32 %v504, 1
          %vm518 = vcmp.ge.s32.totalorder %v517, 0
          %vm519 = vcmp.lt.s32.totalorder %v517, 16
          %vm520 = vmand %vm518, %vm519
          %v521 = vadd.s32 %v504, 2
          %vm522 = vcmp.ge.s32.totalorder %v521, 0
          %vm523 = vcmp.lt.s32.totalorder %v521, 16
          %vm524 = vmand %vm522, %vm523
          %v525 = vadd.s32 %v504, 3
          %vm526 = vcmp.ge.s32.totalorder %v525, 0
          %vm527 = vcmp.lt.s32.totalorder %v525, 16
          %vm528 = vmand %vm526, %vm527
          %v529 = vld [vmem:[#allocation2] ss:$2 sm:$0x3]
          %s530 = scalar_lea.vmem [#allocation2], 1
          %v531 = vld [vmem:[%s530] ss:$2 sm:$0x3]
          %v532 = vstv %s404
          %v533 = vmul.f32 %v532, %v529
          %v534 = vstv %s453
          %v535 = vmul.f32 %v534, %v531
          %v536 = vadd.f32 %v533, %v535
          %v537 = vld [vmem:[#allocation2] ss:$2 sm:$0x7]
          %s538 = scalar_lea.vmem [#allocation2], 1
          %v539 = vld [vmem:[%s538] ss:$2 sm:$0x7]
          %v540 = vstv %s411
          %v541 = vmul.f32 %v540, %v537
          %v542 = vstv %s460
          %v543 = vmul.f32 %v542, %v539
          %v544 = vadd.f32 %v541, %v543
          %546 = vrot.lane.b32.xlu0 %v544, 112
          %v547 = vpop.permute.xlu0 %546
          %v548 = vrot.slane %v547, 1
          %vm549 = vcmask 916480
          %v550 = vsel %vm549, %v547, %v548
          %v552 = vadd.f32 %v536, %v550
          %v553 = vstv %s418
          %v554 = vmul.f32 %v553, %v537
          %v555 = vstv %s467
          %v556 = vmul.f32 %v555, %v539
          %v557 = vadd.f32 %v554, %v556
          %559 = vrot.lane.b32.xlu0 %v557, 96
          %v560 = vpop.permute.xlu0 %559
          %v561 = vrot.slane %v560, 1
          %vm562 = vcmask 785408
          %v563 = vsel %vm562, %v560, %v561
          %v565 = vadd.f32 %v552, %v563
          %v566 = vstv %s425
          %v567 = vmul.f32 %v566, %v537
          %v568 = vstv %s474
          %v569 = vmul.f32 %v568, %v539
          %v570 = vadd.f32 %v567, %v569
          %572 = vrot.lane.b32.xlu0 %v570, 80
          %v573 = vpop.permute.xlu0 %572
          %v574 = vrot.slane %v573, 1
          %vm575 = vcmask 654336
          %v576 = vsel %vm575, %v573, %v574
          %v578 = vadd.f32 %v565, %v576
          %v579 = vstv %s432
          %v580 = vmul.f32 %v579, %v537
          %v581 = vstv %s481
          %v582 = vmul.f32 %v581, %v539
          %v583 = vadd.f32 %v580, %v582
          %585 = vrot.lane.b32.xlu0 %v583, 64
          %v586 = vpop.permute.xlu0 %585
          %v587 = vrot.slane %v586, 1
          %vm588 = vcmask 523264
          %v589 = vsel %vm588, %v586, %v587
          %v591 = vadd.f32 %v578, %v589
          %v592 = vstv %s439
          %v593 = vmul.f32 %v592, %v537
          %v594 = vstv %s488
          %v595 = vmul.f32 %v594, %v539
          %v596 = vadd.f32 %v593, %v595
          %598 = vrot.lane.b32.xlu0 %v596, 48
          %v599 = vpop.permute.xlu0 %598
          %v600 = vrot.slane %v599, 1
          %vm601 = vcmask 392192
          %v602 = vsel %vm601, %v599, %v600
          %v604 = vadd.f32 %v591, %v602
          %v605 = vstv %s446
          %v606 = vmul.f32 %v605, %v537
          %v607 = vstv %s495
          %v608 = vmul.f32 %v607, %v539
          %v609 = vadd.f32 %v606, %v608
          %611 = vrot.lane.b32.xlu0 %v609, 32
          %v612 = vpop.permute.xlu0 %611
          %v613 = vrot.slane %v612, 1
          %vm614 = vcmask 261120
          %v615 = vsel %vm614, %v612, %v613
          %v617 = vadd.f32 %v604, %v615
          %v618 = vsel %vm508, %v617, 0.0
          %v619 = vadd.f32 %v503, %v618
          %v620 = vstv %s405
          %v621 = vmul.f32 %v620, %v537
          %v622 = vstv %s454
          %v623 = vmul.f32 %v622, %v539
          %v624 = vadd.f32 %v621, %v623
          %v625 = vstv %s412
          %v626 = vmul.f32 %v625, %v537
          %v627 = vstv %s461
          %v628 = vmul.f32 %v627, %v539
          %v629 = vadd.f32 %v626, %v628
          %631 = vrot.lane.b32.xlu0 %v629, 112
          %v632 = vpop.permute.xlu0 %631
          %v633 = vrot.slane %v632, 1
          %v634 = vsel %vm549, %v632, %v633
          %v636 = vadd.f32 %v624, %v634
          %v637 = vstv %s419
          %v638 = vmul.f32 %v637, %v537
          %v639 = vstv %s468
          %v640 = vmul.f32 %v639, %v539
          %v641 = vadd.f32 %v638, %v640
          %643 = vrot.lane.b32.xlu0 %v641, 96
          %v644 = vpop.permute.xlu0 %643
          %v645 = vrot.slane %v644, 1
          %v646 = vsel %vm562, %v644, %v645
          %v648 = vadd.f32 %v636, %v646
          %v649 = vstv %s426
          %v650 = vmul.f32 %v649, %v537
          %v651 = vstv %s475
          %v652 = vmul.f32 %v651, %v539
          %v653 = vadd.f32 %v650, %v652
          %655 = vrot.lane.b32.xlu0 %v653, 80
          %v656 = vpop.permute.xlu0 %655
          %v657 = vrot.slane %v656, 1
          %v658 = vsel %vm575, %v656, %v657
          %v660 = vadd.f32 %v648, %v658
          %v661 = vstv %s433
          %v662 = vmul.f32 %v661, %v537
          %v663 = vstv %s482
          %v664 = vmul.f32 %v663, %v539
          %v665 = vadd.f32 %v662, %v664
          %667 = vrot.lane.b32.xlu0 %v665, 64
          %v668 = vpop.permute.xlu0 %667
          %v669 = vrot.slane %v668, 1
          %v670 = vsel %vm588, %v668, %v669
          %v672 = vadd.f32 %v660, %v670
          %v673 = vstv %s440
          %v674 = vmul.f32 %v673, %v537
          %v675 = vstv %s489
          %v676 = vmul.f32 %v675, %v539
          %v677 = vadd.f32 %v674, %v676
          %679 = vrot.lane.b32.xlu0 %v677, 48
          %v680 = vpop.permute.xlu0 %679
          %v681 = vrot.slane %v680, 1
          %v682 = vsel %vm601, %v680, %v681
          %v684 = vadd.f32 %v672, %v682
          %v685 = vstv %s447
          %v686 = vmul.f32 %v685, %v537
          %v687 = vstv %s496
          %v688 = vmul.f32 %v687, %v539
          %v689 = vadd.f32 %v686, %v688
          %691 = vrot.lane.b32.xlu0 %v689, 32
          %v692 = vpop.permute.xlu0 %691
          %v693 = vrot.slane %v692, 1
          %v694 = vsel %vm614, %v692, %v693
          %v696 = vadd.f32 %v684, %v694
          %698 = vrot.lane.b32.xlu0 %v696, 127
          %v699 = vpop.permute.xlu0 %698
          %v700 = vrot.slane %v699, 1
          %vm701 = vcmask 1039360
          %v702 = vsel %vm701, %v699, %v700
          %v704 = vsel %vm512, %v702, 0.0
          %v705 = vadd.f32 %v704, 0.0
          %v706 = vstv %s406
          %v707 = vmul.f32 %v706, %v537
          %v708 = vstv %s455
          %v709 = vmul.f32 %v708, %v539
          %v710 = vadd.f32 %v707, %v709
          %v711 = vstv %s413
          %v712 = vmul.f32 %v711, %v537
          %v713 = vstv %s462
          %v714 = vmul.f32 %v713, %v539
          %v715 = vadd.f32 %v712, %v714
          %717 = vrot.lane.b32.xlu0 %v715, 112
          %v718 = vpop.permute.xlu0 %717
          %v719 = vrot.slane %v718, 1
          %v720 = vsel %vm549, %v718, %v719
          %v722 = vadd.f32 %v710, %v720
          %v723 = vstv %s420
          %v724 = vmul.f32 %v723, %v537
          %v725 = vstv %s469
          %v726 = vmul.f32 %v725, %v539
          %v727 = vadd.f32 %v724, %v726
          %729 = vrot.lane.b32.xlu0 %v727, 96
          %v730 = vpop.permute.xlu0 %729
          %v731 = vrot.slane %v730, 1
          %v732 = vsel %vm562, %v730, %v731
          %v734 = vadd.f32 %v722, %v732
          %v735 = vstv %s427
          %v736 = vmul.f32 %v735, %v537
          %v737 = vstv %s476
          %v738 = vmul.f32 %v737, %v539
          %v739 = vadd.f32 %v736, %v738
          %741 = vrot.lane.b32.xlu0 %v739, 80
          %v742 = vpop.permute.xlu0 %741
          %v743 = vrot.slane %v742, 1
          %v744 = vsel %vm575, %v742, %v743
          %v746 = vadd.f32 %v734, %v744
          %v747 = vstv %s434
          %v748 = vmul.f32 %v747, %v537
          %v749 = vstv %s483
          %v750 = vmul.f32 %v749, %v539
          %v751 = vadd.f32 %v748, %v750
          %753 = vrot.lane.b32.xlu0 %v751, 64
          %v754 = vpop.permute.xlu0 %753
          %v755 = vrot.slane %v754, 1
          %v756 = vsel %vm588, %v754, %v755
          %v758 = vadd.f32 %v746, %v756
          %v759 = vstv %s441
          %v760 = vmul.f32 %v759, %v537
          %v761 = vstv %s490
          %v762 = vmul.f32 %v761, %v539
          %v763 = vadd.f32 %v760, %v762
          %765 = vrot.lane.b32.xlu0 %v763, 48
          %v766 = vpop.permute.xlu0 %765
          %v767 = vrot.slane %v766, 1
          %v768 = vsel %vm601, %v766, %v767
          %v770 = vadd.f32 %v758, %v768
          %v771 = vstv %s448
          %v772 = vmul.f32 %v771, %v537
          %v773 = vstv %s497
          %v774 = vmul.f32 %v773, %v539
          %v775 = vadd.f32 %v772, %v774
          %777 = vrot.lane.b32.xlu0 %v775, 32
          %v778 = vpop.permute.xlu0 %777
          %v779 = vrot.slane %v778, 1
          %v780 = vsel %vm614, %v778, %v779
          %v782 = vadd.f32 %v770, %v780
          %784 = vrot.lane.b32.xlu0 %v782, 126
          %v785 = vpop.permute.xlu0 %784
          %v786 = vrot.slane %v785, 1
          %vm787 = vcmask 1031168
          %v788 = vsel %vm787, %v785, %v786
          %v790 = vsel %vm516, %v788, 0.0
          %v791 = vadd.f32 %v619, %v790
          %v792 = vstv %s407
          %v793 = vmul.f32 %v792, %v537
          %v794 = vstv %s456
          %v795 = vmul.f32 %v794, %v539
          %v796 = vadd.f32 %v793, %v795
          %v797 = vstv %s414
          %v798 = vmul.f32 %v797, %v537
          %v799 = vstv %s463
          %v800 = vmul.f32 %v799, %v539
          %v801 = vadd.f32 %v798, %v800
          %803 = vrot.lane.b32.xlu0 %v801, 112
          %v804 = vpop.permute.xlu0 %803
          %v805 = vrot.slane %v804, 1
          %v806 = vsel %vm549, %v804, %v805
          %v808 = vadd.f32 %v796, %v806
          %v809 = vstv %s421
          %v810 = vmul.f32 %v809, %v537
          %v811 = vstv %s470
          %v812 = vmul.f32 %v811, %v539
          %v813 = vadd.f32 %v810, %v812
          %815 = vrot.lane.b32.xlu0 %v813, 96
          %v816 = vpop.permute.xlu0 %815
          %v817 = vrot.slane %v816, 1
          %v818 = vsel %vm562, %v816, %v817
          %v820 = vadd.f32 %v808, %v818
          %v821 = vstv %s428
          %v822 = vmul.f32 %v821, %v537
          %v823 = vstv %s477
          %v824 = vmul.f32 %v823, %v539
          %v825 = vadd.f32 %v822, %v824
          %827 = vrot.lane.b32.xlu0 %v825, 80
          %v828 = vpop.permute.xlu0 %827
          %v829 = vrot.slane %v828, 1
          %v830 = vsel %vm575, %v828, %v829
          %v832 = vadd.f32 %v820, %v830
          %v833 = vstv %s435
          %v834 = vmul.f32 %v833, %v537
          %v835 = vstv %s484
          %v836 = vmul.f32 %v835, %v539
          %v837 = vadd.f32 %v834, %v836
          %839 = vrot.lane.b32.xlu0 %v837, 64
          %v840 = vpop.permute.xlu0 %839
          %v841 = vrot.slane %v840, 1
          %v842 = vsel %vm588, %v840, %v841
          %v844 = vadd.f32 %v832, %v842
          %v845 = vstv %s442
          %v846 = vmul.f32 %v845, %v537
          %v847 = vstv %s491
          %v848 = vmul.f32 %v847, %v539
          %v849 = vadd.f32 %v846, %v848
          %851 = vrot.lane.b32.xlu0 %v849, 48
          %v852 = vpop.permute.xlu0 %851
          %v853 = vrot.slane %v852, 1
          %v854 = vsel %vm601, %v852, %v853
          %v856 = vadd.f32 %v844, %v854
          %v857 = vstv %s449
          %v858 = vmul.f32 %v857, %v537
          %v859 = vstv %s498
          %v860 = vmul.f32 %v859, %v539
          %v861 = vadd.f32 %v858, %v860
          %863 = vrot.lane.b32.xlu0 %v861, 32
          %v864 = vpop.permute.xlu0 %863
          %v865 = vrot.slane %v864, 1
          %v866 = vsel %vm614, %v864, %v865
          %v868 = vadd.f32 %v856, %v866
          %870 = vrot.lane.b32.xlu0 %v868, 125
          %v871 = vpop.permute.xlu0 %870
          %v872 = vrot.slane %v871, 1
          %vm873 = vcmask 1022976
          %v874 = vsel %vm873, %v871, %v872
          %v876 = vadd.f32 %v705, %v874
          %v877 = vstv %s408
          %v878 = vmul.f32 %v877, %v537
          %v879 = vstv %s457
          %v880 = vmul.f32 %v879, %v539
          %v881 = vadd.f32 %v878, %v880
          %v882 = vstv %s415
          %v883 = vmul.f32 %v882, %v537
          %v884 = vstv %s464
          %v885 = vmul.f32 %v884, %v539
          %v886 = vadd.f32 %v883, %v885
          %888 = vrot.lane.b32.xlu0 %v886, 112
          %v889 = vpop.permute.xlu0 %888
          %v890 = vrot.slane %v889, 1
          %v891 = vsel %vm549, %v889, %v890
          %v893 = vadd.f32 %v881, %v891
          %v894 = vstv %s422
          %v895 = vmul.f32 %v894, %v537
          %v896 = vstv %s471
          %v897 = vmul.f32 %v896, %v539
          %v898 = vadd.f32 %v895, %v897
          %900 = vrot.lane.b32.xlu0 %v898, 96
          %v901 = vpop.permute.xlu0 %900
          %v902 = vrot.slane %v901, 1
          %v903 = vsel %vm562, %v901, %v902
          %v905 = vadd.f32 %v893, %v903
          %v906 = vstv %s429
          %v907 = vmul.f32 %v906, %v537
          %v908 = vstv %s478
          %v909 = vmul.f32 %v908, %v539
          %v910 = vadd.f32 %v907, %v909
          %912 = vrot.lane.b32.xlu0 %v910, 80
          %v913 = vpop.permute.xlu0 %912
          %v914 = vrot.slane %v913, 1
          %v915 = vsel %vm575, %v913, %v914
          %v917 = vadd.f32 %v905, %v915
          %v918 = vstv %s436
          %v919 = vmul.f32 %v918, %v537
          %v920 = vstv %s485
          %v921 = vmul.f32 %v920, %v539
          %v922 = vadd.f32 %v919, %v921
          %924 = vrot.lane.b32.xlu0 %v922, 64
          %v925 = vpop.permute.xlu0 %924
          %v926 = vrot.slane %v925, 1
          %v927 = vsel %vm588, %v925, %v926
          %v929 = vadd.f32 %v917, %v927
          %v930 = vstv %s443
          %v931 = vmul.f32 %v930, %v537
          %v932 = vstv %s492
          %v933 = vmul.f32 %v932, %v539
          %v934 = vadd.f32 %v931, %v933
          %936 = vrot.lane.b32.xlu0 %v934, 48
          %v937 = vpop.permute.xlu0 %936
          %v938 = vrot.slane %v937, 1
          %v939 = vsel %vm601, %v937, %v938
          %v941 = vadd.f32 %v929, %v939
          %v942 = vstv %s450
          %v943 = vmul.f32 %v942, %v537
          %v944 = vstv %s499
          %v945 = vmul.f32 %v944, %v539
          %v946 = vadd.f32 %v943, %v945
          %948 = vrot.lane.b32.xlu0 %v946, 32
          %v949 = vpop.permute.xlu0 %948
          %v950 = vrot.slane %v949, 1
          %v951 = vsel %vm614, %v949, %v950
          %v953 = vadd.f32 %v941, %v951
          %955 = vrot.lane.b32.xlu0 %v953, 124
          %v956 = vpop.permute.xlu0 %955
          %v957 = vrot.slane %v956, 1
          %vm958 = vcmask 1014784
          %v959 = vsel %vm958, %v956, %v957
          %v961 = vsel %vm520, %v959, 0.0
          %v962 = vadd.f32 %v791, %v961
          %v963 = vstv %s409
          %v964 = vmul.f32 %v963, %v537
          %v965 = vstv %s458
          %v966 = vmul.f32 %v965, %v539
          %v967 = vadd.f32 %v964, %v966
          %v968 = vstv %s416
          %v969 = vmul.f32 %v968, %v537
          %v970 = vstv %s465
          %v971 = vmul.f32 %v970, %v539
          %v972 = vadd.f32 %v969, %v971
          %974 = vrot.lane.b32.xlu0 %v972, 112
          %v975 = vpop.permute.xlu0 %974
          %v976 = vrot.slane %v975, 1
          %v977 = vsel %vm549, %v975, %v976
          %v979 = vadd.f32 %v967, %v977
          %v980 = vstv %s423
          %v981 = vmul.f32 %v980, %v537
          %v982 = vstv %s472
          %v983 = vmul.f32 %v982, %v539
          %v984 = vadd.f32 %v981, %v983
          %986 = vrot.lane.b32.xlu0 %v984, 96
          %v987 = vpop.permute.xlu0 %986
          %v988 = vrot.slane %v987, 1
          %v989 = vsel %vm562, %v987, %v988
          %v991 = vadd.f32 %v979, %v989
          %v992 = vstv %s430
          %v993 = vmul.f32 %v992, %v537
          %v994 = vstv %s479
          %v995 = vmul.f32 %v994, %v539
          %v996 = vadd.f32 %v993, %v995
          %998 = vrot.lane.b32.xlu0 %v996, 80
          %v999 = vpop.permute.xlu0 %998
          %v1000 = vrot.slane %v999, 1
          %v1001 = vsel %vm575, %v999, %v1000
          %v1003 = vadd.f32 %v991, %v1001
          %v1004 = vstv %s437
          %v1005 = vmul.f32 %v1004, %v537
          %v1006 = vstv %s486
          %v1007 = vmul.f32 %v1006, %v539
          %v1008 = vadd.f32 %v1005, %v1007
          %1010 = vrot.lane.b32.xlu0 %v1008, 64
          %v1011 = vpop.permute.xlu0 %1010
          %v1012 = vrot.slane %v1011, 1
          %v1013 = vsel %vm588, %v1011, %v1012
          %v1015 = vadd.f32 %v1003, %v1013
          %v1016 = vstv %s444
          %v1017 = vmul.f32 %v1016, %v537
          %v1018 = vstv %s493
          %v1019 = vmul.f32 %v1018, %v539
          %v1020 = vadd.f32 %v1017, %v1019
          %1022 = vrot.lane.b32.xlu0 %v1020, 48
          %v1023 = vpop.permute.xlu0 %1022
          %v1024 = vrot.slane %v1023, 1
          %v1025 = vsel %vm601, %v1023, %v1024
          %v1027 = vadd.f32 %v1015, %v1025
          %v1028 = vstv %s451
          %v1029 = vmul.f32 %v1028, %v537
          %v1030 = vstv %s500
          %v1031 = vmul.f32 %v1030, %v539
          %v1032 = vadd.f32 %v1029, %v1031
          %1034 = vrot.lane.b32.xlu0 %v1032, 32
          %v1035 = vpop.permute.xlu0 %1034
          %v1036 = vrot.slane %v1035, 1
          %v1037 = vsel %vm614, %v1035, %v1036
          %v1039 = vadd.f32 %v1027, %v1037
          %1041 = vrot.lane.b32.xlu0 %v1039, 123
          %v1042 = vpop.permute.xlu0 %1041
          %v1043 = vrot.slane %v1042, 1
          %vm1044 = vcmask 1006592
          %v1045 = vsel %vm1044, %v1042, %v1043
          %v1047 = vsel %vm524, %v1045, 0.0
          %v1048 = vadd.f32 %v876, %v1047
          %v1049 = vstv %s410
          %v1050 = vmul.f32 %v1049, %v537
          %v1051 = vstv %s459
          %v1052 = vmul.f32 %v1051, %v539
          %v1053 = vadd.f32 %v1050, %v1052
          %v1054 = vstv %s417
          %v1055 = vmul.f32 %v1054, %v537
          %v1056 = vstv %s466
          %v1057 = vmul.f32 %v1056, %v539
          %v1058 = vadd.f32 %v1055, %v1057
          %1060 = vrot.lane.b32.xlu0 %v1058, 112
          %v1061 = vpop.permute.xlu0 %1060
          %v1062 = vrot.slane %v1061, 1
          %v1063 = vsel %vm549, %v1061, %v1062
          %v1065 = vadd.f32 %v1053, %v1063
          %v1066 = vstv %s424
          %v1067 = vmul.f32 %v1066, %v537
          %v1068 = vstv %s473
          %v1069 = vmul.f32 %v1068, %v539
          %v1070 = vadd.f32 %v1067, %v1069
          %1072 = vrot.lane.b32.xlu0 %v1070, 96
          %v1073 = vpop.permute.xlu0 %1072
          %v1074 = vrot.slane %v1073, 1
          %v1075 = vsel %vm562, %v1073, %v1074
          %v1077 = vadd.f32 %v1065, %v1075
          %v1078 = vstv %s431
          %v1079 = vmul.f32 %v1078, %v537
          %v1080 = vstv %s480
          %v1081 = vmul.f32 %v1080, %v539
          %v1082 = vadd.f32 %v1079, %v1081
          %1084 = vrot.lane.b32.xlu0 %v1082, 80
          %v1085 = vpop.permute.xlu0 %1084
          %v1086 = vrot.slane %v1085, 1
          %v1087 = vsel %vm575, %v1085, %v1086
          %v1089 = vadd.f32 %v1077, %v1087
          %v1090 = vstv %s438
          %v1091 = vmul.f32 %v1090, %v537
          %v1092 = vstv %s487
          %v1093 = vmul.f32 %v1092, %v539
          %v1094 = vadd.f32 %v1091, %v1093
          %1096 = vrot.lane.b32.xlu0 %v1094, 64
          %v1097 = vpop.permute.xlu0 %1096
          %v1098 = vrot.slane %v1097, 1
          %v1099 = vsel %vm588, %v1097, %v1098
          %v1101 = vadd.f32 %v1089, %v1099
          %v1102 = vstv %s445
          %v1103 = vmul.f32 %v1102, %v537
          %v1104 = vstv %s494
          %v1105 = vmul.f32 %v1104, %v539
          %v1106 = vadd.f32 %v1103, %v1105
          %1108 = vrot.lane.b32.xlu0 %v1106, 48
          %v1109 = vpop.permute.xlu0 %1108
          %v1110 = vrot.slane %v1109, 1
          %v1111 = vsel %vm601, %v1109, %v1110
          %v1113 = vadd.f32 %v1101, %v1111
          %v1114 = vstv %s452
          %v1115 = vmul.f32 %v1114, %v537
          %v1116 = vstv %s501
          %v1117 = vmul.f32 %v1116, %v539
          %v1118 = vadd.f32 %v1115, %v1117
          %1120 = vrot.lane.b32.xlu0 %v1118, 32
          %v1121 = vpop.permute.xlu0 %1120
          %v1122 = vrot.slane %v1121, 1
          %v1123 = vsel %vm614, %v1121, %v1122
          %v1125 = vadd.f32 %v1113, %v1123
          %1127 = vrot.lane.b32.xlu0 %v1125, 122
          %v1128 = vpop.permute.xlu0 %1127
          %v1129 = vrot.slane %v1128, 1
          %vm1130 = vcmask 998400
          %v1131 = vsel %vm1130, %v1128, %v1129
          %v1133 = vsel %vm528, %v1131, 0.0
          %v1134 = vadd.f32 %v962, %v1133
          %v1135 = vadd.f32 %v1134, %v1048
          %v1136 = vxor.u32 %v1135, 2147483648
          %v1137 = vmul.f32 %v1136, 1.442695
          %v1138 = vpow.pop %v1137
          %v1139 = vadd.f32 %v1138, 1.0
          %v1140 = vrcp.pop %v1139
          %v1141 = vmul.f32 1.0, %v1140
          %v1142 = vlaneseq
          %vm1143 = vcmp.ge.s32.totalorder %v1142, 0
          %vm1144 = vcmp.lt.s32.totalorder %v1142, 256
          %vm1145 = vmand %vm1143, %vm1144
          %1146 = vst.msk [vmem:[%s244] sm:$0x3] %vm1145, %v1141
        $region60: #{tpu_custom_call.1} parent=35 // pred_fallthru
          _
        %s1147 = sand.u32 %s134, 1
        %s1148 = scalar_lea.sflag [#allocation6], %s1147
        %s1149 = sand.u32 %s134, 1
        %s1150 = smul.addr %s1149, 2
        %s1151 = scalar_lea.vmem [#allocation9], %s1150
        // Predicated region
        $region61: #{tpu_custom_call.1} parent=35 // pred_check
          %p1152 = pneg %p144
        $region62: #{tpu_custom_call.1} parent=35 // pred_check_branch
          %1154 = sbr.rel (%p1152) target = $region64
        $region63: #{tpu_custom_call.1} parent=35 // pred_region
          %s1156 = ssub.s32 32, 32
          %1157 = vsyncadd %s1148, %s1156
          %s1158 = smul.addr %s27, 2
          %s1159 = smul.addr %s1158, 16
          %s1160 = scalar_lea.hbm %s4, %s1159
          %s1162 = sshll.u32 %s1151, 4
          %s1163 = int_to_ptr.vmem [resolvable:$true] %s1162
          %1165 = dma.vmem_to_hbm [thread:$0]  %s1163, 32, %s1160, %s1148
        $region64: #{tpu_custom_call.1} parent=35 // pred_fallthru
          _
      $region36: #{tpu_custom_call.1} parent=5 // pred_fallthru
        _
      %p1166 = scmp.le.s32.totalorder 2, %s18
      // Predicated region
      $region65: #{tpu_custom_call.1} parent=5 // pred_check
        %p1167 = pneg %p1166
      $region66: #{tpu_custom_call.1} parent=5 // pred_check_branch
        %1169 = sbr.rel (%p1167) target = $region68
      $region67: #{tpu_custom_call.1} parent=5 // pred_region
        %s1170 = ssub.s32 %s18, 2
        // Predicated region
        $region69: #{tpu_custom_call.1} parent=67 // pred_check
          %p1171 = pneg %p150
        $region70: #{tpu_custom_call.1} parent=67 // pred_check_branch
          %1173 = sbr.rel (%p1171) target = $region72
        $region71: #{tpu_custom_call.1} parent=67 // pred_region
          %s1174 = sand.u32 %s135, 1
          %s1175 = scalar_lea.sflag [#allocation6], %s1174
          %s1176 = sand.u32 %s135, 1
          %s1177 = smul.addr %s1176, 2
          %s1178 = scalar_lea.vmem [#allocation9], %s1177
          %1179 = dma.done %s1175, 32
        $region72: #{tpu_custom_call.1} parent=67 // pred_fallthru
          _
      $region68: #{tpu_custom_call.1} parent=5 // pred_fallthru
        _
    $region6: #{tpu_custom_call.1} parent=1 // loop_footer
      %s22 = sadd.s32 1, %s18
    $region7: #{tpu_custom_call.1} parent=1 // loop_footer_branch
      %17 = sbr.rel target = $region3
    $region8: #{tpu_custom_call.1} parent=1 // loop_exit
      _
    %1180 = vsyncpa [#allocation5], 1
    %s1181 = scalar_lea.sflag [#allocation5], 1
    %1182 = vsyncpa %s1181, 1
    %1183 = vsyncpa [#allocation6], 1
    %s1184 = scalar_lea.sflag [#allocation6], 1
    %1185 = vsyncpa %s1184, 1
    %1186 = vsyncpa [#allocation7], 1
    %s1187 = scalar_lea.sflag [#allocation7], 1
    %1188 = vsyncpa %s1187, 1

</llo_original>
